<compile_context>
chip_gen: v6e
topology: v6e:2x2x1
jax: 0.10.0
libtpu: 0.0.40
codegen_flags: <defaults>
</compile_context>

<pallas_src>
import functools
import math

import numpy as np

import jax
import jax.numpy as jnp
from jax.experimental import pallas as pl
from jax.experimental.pallas import tpu as pltpu


# ----------------------------------------------------------------------------
# Parameter glue (host / numpy): 2D sincos position embedding + PyTorch-style
# bicubic resize (F.interpolate mode='bicubic', align_corners=False, A=-0.75).
# TODO(synk): get_abs_pos (bicubic resize) and the sincos table are deterministic
# host-side parameter glue, not a Pallas kernel.
# ----------------------------------------------------------------------------
def get_1d_sincos_pos_embed_from_grid(embed_dim, pos):
    assert embed_dim % 2 == 0
    omega = np.arange(embed_dim // 2, dtype=np.float32)
    omega /= embed_dim / 2.0
    omega = 1.0 / 10000 ** omega
    pos = pos.reshape(-1)
    out = np.einsum("m,d->md", pos, omega)
    return np.concatenate([np.sin(out), np.cos(out)], axis=1)


def get_2d_sincos_pos_embed_from_grid(embed_dim, grid):
    assert embed_dim % 2 == 0
    emb_h = get_1d_sincos_pos_embed_from_grid(embed_dim // 2, grid[0])
    emb_w = get_1d_sincos_pos_embed_from_grid(embed_dim // 2, grid[1])
    return np.concatenate([emb_h, emb_w], axis=1)


def get_2d_sincos_pos_embed(embed_dim, grid_size):
    grid_h = np.arange(grid_size, dtype=np.float32)
    grid_w = np.arange(grid_size, dtype=np.float32)
    grid = np.meshgrid(grid_w, grid_h)
    grid = np.stack(grid, axis=0).reshape([2, 1, grid_size, grid_size])
    return get_2d_sincos_pos_embed_from_grid(embed_dim, grid)


def get_matry_n(num_visual_tokens):
    num_visual_tokens = int(num_visual_tokens)
    if 1 <= num_visual_tokens <= 256:
        return num_visual_tokens
    raise ValueError(f"Invalid input: {num_visual_tokens}")


def torch_bicubic_pos_resize(pos, src_size, tgt_size):
    """pos: (src_size*src_size, D) -> (tgt_h*tgt_w, D), PyTorch bicubic semantics."""
    d = pos.shape[1]
    img = pos.reshape(src_size, src_size, d).transpose(2, 0, 1)  # (D, H, W)
    out_h, out_w = tgt_size
    A = -0.75

    def coeffs(in_size, out_size):
        scale = in_size / out_size
        x = (np.arange(out_size, dtype=np.float64) + 0.5) * scale - 0.5
        x0 = np.floor(x)
        t = x - x0
        x0 = x0.astype(np.int64)

        def c1(s):  # |s| <= 1
            return ((A + 2.0) * s - (A + 3.0)) * s * s + 1.0

        def c2(s):  # 1 < |s| < 2
            return ((A * s - 5.0 * A) * s + 8.0 * A) * s - 4.0 * A

        w = np.stack([c2(t + 1.0), c1(t), c1(1.0 - t), c2(2.0 - t)], axis=-1)
        idx = np.clip(np.stack([x0 - 1, x0, x0 + 1, x0 + 2], axis=-1), 0, in_size - 1)
        return w, idx

    wh, ih = coeffs(src_size, out_h)
    ww, iw = coeffs(src_size, out_w)
    tmp = img[:, ih, :]                            # (D, out_h, 4, W)
    tmp = np.einsum("dhfw,hf->dhw", tmp, wh)       # (D, out_h, W)
    tmp = tmp[:, :, iw]                            # (D, out_h, out_w, 4)
    out = np.einsum("dhwf,wf->dhw", tmp, ww)       # (D, out_h, out_w)
    return out.transpose(1, 2, 0).reshape(out_h * out_w, d).astype(np.float32)


def _vmem_capacity_bytes():
    try:
        return int(pltpu.get_tpu_info().vmem_capacity_bytes)
    except Exception:
        return 64 << 20   # conservative: v7x per-TC VMEM


# ----------------------------------------------------------------------------
# Pallas kernel: one (resampler r, batch block) grid point per invocation.
# Only the batch-dependent hot path lives here:
#   LayerNorm(x) -> full-width value projection -> per-head p@v into a concat
#   scratch -> ONE fused (Mp, D) @ (D, Ep) out-projection -> + folded bias.
# ----------------------------------------------------------------------------
def _resampler_kernel(p_ref, x_ref, lnw_ref, lnb_ref, wv_ref, wf_ref, bfin_ref,
                      out_ref, o_scr, *, num_heads, head_dim, eps, compute_dtype):
    """Block shapes seen by the kernel (leading r dim squeezed out via None):
       p_ref    (H, Mp, S)   bf16  batch-invariant softmax(q k^T / sqrt(Dh))
       x_ref    (TB, S, D)   bf16  visual features
       lnw_ref  (1, D)       f32   ln_v weight
       lnb_ref  (1, D)       f32   ln_v bias
       wv_ref   (D, D)       bf16  full value projection (unsplit)
       wf_ref   (D, Ep)      bf16  fused (w_out @ proj), unsplit
       bfin_ref (1, Ep)      f32   folded bias (b_v @ W_fused + b_out @ proj)
       out_ref  (TB, Mp, Ep)
       o_scr    (Mp, D)      bf16  VMEM scratch holding concatenated head outputs
    """
    lnw = lnw_ref[...]          # (1, D)
    lnb = lnb_ref[...]          # (1, D)
    bfin = bfin_ref[...]        # (1, Ep)
    tb = x_ref.shape[0]
    dh = head_dim

    @pl.loop(0, tb)             # bounded live ranges (no static unroll over TB)
    def _(b):
        x = x_ref[b].astype(jnp.float32)                     # (S, D), LN in f32
        mu = jnp.mean(x, axis=-1, keepdims=True)
        var = jnp.mean(jnp.square(x - mu), axis=-1, keepdims=True)
        x_ln = ((x - mu) * jax.lax.rsqrt(var + eps) * lnw + lnb).astype(compute_dtype)

        # Full-width value projection: (S, D) @ (D, D) fills the 256-lane MXU.
        v = jnp.dot(x_ln, wv_ref[...],
                    preferred_element_type=jnp.float32).astype(compute_dtype)  # (S, D)

        # Per-head attention readout written into the concatenated (Mp, D) scratch
        # at static lane offsets (free 128-aligned views when Dh % 128 == 0).
        for h in range(num_heads):
            o_h = jnp.dot(p_ref[h], v[:, h * dh:(h + 1) * dh],
                          preferred_element_type=jnp.float32)                   # (Mp, Dh)
            o_scr[:, h * dh:(h + 1) * dh] = o_h.astype(compute_dtype)

        # Single fused out-projection (w_out @ proj pre-fused): (Mp, D) @ (D, Ep).
        y = jnp.dot(o_scr[...], wf_ref[...], preferred_element_type=jnp.float32)
        out_ref[b] = (y + bfin).astype(out_ref.dtype)


# ----------------------------------------------------------------------------
# Parameter preparation: run ONCE per weight set and cache the result.
# Everything here is batch-invariant (keys/queries are pure position embeddings),
# so hoisting the q/k LayerNorm, in-projections, logits and softmax is exact.
# ----------------------------------------------------------------------------
def prepare_multi_resampler(params, *, num_visual_tokens, tgt_size, num_heads,
                            grid_size, eps=1e-6, compute_dtype=jnp.bfloat16):
    R, _, D = params["query"].shape
    E = params["proj"].shape[-1]
    S = tgt_size[0] * tgt_size[1]
    assert D % num_heads == 0, "num_heads must divide kv_dim"
    Dh = D // num_heads
    M = get_matry_n(num_visual_tokens // R)

    # ---- host glue: pos embeddings (fp16 storage round trip, matches .half()) ----
    pos16 = np.asarray(params["pos_embed_f16"])                           # (G*G, D) fp16
    qpe = params["query"][:, :M, :] + jnp.asarray(
        pos16[:M].astype(np.float32))[None]                               # (R, M, D)
    kpe_np = torch_bicubic_pos_resize(pos16.astype(np.float32), grid_size, tgt_size)
    kpe_np = kpe_np.astype(np.float16).astype(np.float32)                 # get_abs_pos -> half -> f32
    kpe = jnp.asarray(kpe_np)                                             # (S, D), shared by all r

    lnw, lnb = params["ln_w"], params["ln_b"]                             # (R, 3, D)
    w_in, b_in = params["w_in"], params["b_in"]                           # (R, 3, D, D), (R, 3, D)

    def ln(z, w, b):
        mu = jnp.mean(z, -1, keepdims=True)
        var = jnp.mean(jnp.square(z - mu), -1, keepdims=True)
        return (z - mu) * jax.lax.rsqrt(var + eps) * w + b

    # ---- batch-invariant per-resampler attention probabilities (exact hoist) ----
    q = jnp.einsum("rmd,rde->rme", ln(qpe, lnw[:, 0:1], lnb[:, 0:1]), w_in[:, 0]) + b_in[:, 0][:, None]
    k = jnp.einsum("rsd,rde->rse", ln(kpe[None], lnw[:, 1:2], lnb[:, 1:2]), w_in[:, 1]) + b_in[:, 1][:, None]
    qh = q.reshape(R, M, num_heads, Dh).transpose(0, 2, 1, 3) * (1.0 / math.sqrt(Dh))
    kh = k.reshape(R, S, num_heads, Dh).transpose(0, 2, 1, 3)
    logits = jnp.einsum("rhmd,rhsd->rhms", qh, kh)                        # (R, H, M, S)
    p = jax.nn.softmax(logits, axis=-1)

    # ---- parameter fusion: W_fused = w_out @ proj; fold all biases into one ----
    W_fused = jnp.einsum("rde,ref->rdf", params["w_out"], params["proj"])           # (R, D, E)
    b_final = (jnp.einsum("rd,rde->re", b_in[:, 2], W_fused)                        # exact: softmax rows sum to 1
               + jnp.einsum("rd,rde->re", params["b_out"][:, 0], params["proj"]))   # b_out @ proj

    # ---- pad output-facing dims to (8, 128) tiles for lane-dense unmasked stores ----
    Mp = -(-M // 8) * 8
    Ep = -(-E // 128) * 128
    if Mp != M:
        p = jnp.pad(p, ((0, 0), (0, 0), (0, Mp - M), (0, 0)))
    wf = W_fused
    if Ep != E:
        wf = jnp.pad(wf, ((0, 0), (0, 0), (0, Ep - E)))
        b_final = jnp.pad(b_final, ((0, 0), (0, Ep - E)))

    return dict(
        # p is quantized to bf16: softmax rows sum to 1 +/- ~2^-8; keep f32 if
        # tighter accuracy is ever required.
        p=p.astype(compute_dtype),                 # (R, H, Mp, S)
        lnw_v=lnw[:, 2:3], lnb_v=lnb[:, 2:3],      # (R, 1, D) f32
        wv=w_in[:, 2].astype(compute_dtype),       # (R, D, D)  unsplit value proj
        wf=wf.astype(compute_dtype),               # (R, D, Ep) fused out proj
        bfin=b_final[:, None, :],                  # (R, 1, Ep) f32
        qpe=qpe, kpe=kpe,
        meta=dict(R=R, D=D, E=E, S=S, M=M, Mp=Mp, Ep=Ep, num_heads=num_heads,
                  head_dim=Dh, eps=eps, compute_dtype=compute_dtype),
    )


def multi_resampler_forward(xs, prep, *, batch_block=None, out_dtype=jnp.float32,
                            vmem_limit_bytes=None):
    """xs: (R, N, S, kv_dim); prep: output of prepare_multi_resampler (cached)."""
    meta = prep["meta"]
    R, D, E, S = meta["R"], meta["D"], meta["E"], meta["S"]
    M, Mp, Ep = meta["M"], meta["Mp"], meta["Ep"]
    H, Dh = meta["num_heads"], meta["head_dim"]
    eps, compute_dtype = meta["eps"], meta["compute_dtype"]

    Rx, N, Sx, Dx = xs.shape
    assert Rx == R and Sx == S and Dx == D

    xs_c = xs.astype(compute_dtype)                 # bf16 I/O: halves HBM traffic / VMEM blocks

    # ---- TB sizing from a generation-aware VMEM budget (v7x has only 64 MiB) ----
    cap = _vmem_capacity_bytes()
    in_isz = jnp.dtype(compute_dtype).itemsize
    out_isz = jnp.dtype(out_dtype).itemsize
    per_b = S * D * in_isz + Mp * Ep * out_isz      # x block + out block, per batch item
    if batch_block is None:
        budget = max(1, int(0.25 * cap))            # x/out double-buffered get ~25% of VMEM
        tb_cap = max(1, min(8, budget // max(1, 2 * per_b)))
        TB = 1
        for t in range(1, min(tb_cap, N) + 1):
            if N % t == 0:
                TB = t
    else:
        TB = batch_block
        assert N % TB == 0
    NB = N // TB

    # ---- always set vmem_limit_bytes from the actual block footprint ----
    w_bytes = (H * Mp * S + D * D + D * Ep) * jnp.dtype(compute_dtype).itemsize \
              + (2 * D + Ep) * 4
    scratch_bytes = Mp * D * jnp.dtype(compute_dtype).itemsize
    needed = 2 * TB * per_b + 2 * w_bytes + scratch_bytes   # worst case: weights double-buffered
    if vmem_limit_bytes is None:
        vmem_limit_bytes = min(int(0.9 * cap),
                               max(32 << 20, int(1.5 * needed) + (4 << 20)))

    kernel = functools.partial(_resampler_kernel, num_heads=H, head_dim=Dh,
                               eps=eps, compute_dtype=compute_dtype)

    def build(single_buffer_weights):
        # r-constant inputs: block index constant over the inner batch axis, so
        # double-buffering them only doubles VMEM footprint -> request 1 buffer.
        def wspec(shape, imap):
            if single_buffer_weights:
                return pl.BlockSpec(shape, imap, pipeline_mode=pl.Buffered(1))
            return pl.BlockSpec(shape, imap)

        return pl.pallas_call(
            kernel,
            out_shape=jax.ShapeDtypeStruct((N, R, Mp, Ep), out_dtype),
            grid_spec=pltpu.PrefetchScalarGridSpec(
                num_scalar_prefetch=0,
                grid=(R, NB),                       # r outermost: weights DMA'd once per r
                in_specs=[
                    wspec((None, H, Mp, S),  lambda r, b: (r, 0, 0, 0)),   # p (probs)
                    pl.BlockSpec((None, TB, S, D), lambda r, b: (r, b, 0, 0)),  # xs
                    wspec((None, 1, D),      lambda r, b: (r, 0, 0)),      # ln_v weight
                    wspec((None, 1, D),      lambda r, b: (r, 0, 0)),      # ln_v bias
                    wspec((None, D, D),      lambda r, b: (r, 0, 0)),      # W_v (unsplit)
                    wspec((None, D, Ep),     lambda r, b: (r, 0, 0)),      # W_fused (unsplit)
                    wspec((None, 1, Ep),     lambda r, b: (r, 0, 0)),      # folded bias
                ],
                out_specs=pl.BlockSpec((TB, None, Mp, Ep), lambda r, b: (b, r, 0, 0)),
                scratch_shapes=[pltpu.VMEM((Mp, D), compute_dtype)],       # concat head outputs
            ),
            compiler_params=pltpu.CompilerParams(
                # R is small/odd -> mark it "arbitrary" so v7x megacore splits on batch.
                dimension_semantics=("arbitrary", "parallel"),
                vmem_limit_bytes=int(vmem_limit_bytes)),
        )

    # TODO(synk): if VMEM is still tight at very large E on v7x, add a third grid
    # axis tiling Ep for wf/bfin/out and compute the (Mp, D) scratch once per batch
    # item under pl.when.
    args = (prep["p"], xs_c, prep["lnw_v"], prep["lnb_v"], prep["wv"], prep["wf"], prep["bfin"])
    try:
        out = jax.block_until_ready(build(True)(*args))
    except Exception:
        # Fallback for JAX builds that reject single-buffered pipeline_mode on BlockSpecs.
        out = build(False)(*args)

    # slice off tile padding, then torch.cat(outs, dim=1) over resamplers
    return out[:, :, :M, :E].astype(jnp.float32).reshape(N, R * M, E)


# ----------------------------------------------------------------------------
# Pure-JAX f32 reference (faithful module math: separate q/k/v LN+proj per call,
# per-head softmax attention, separate out_proj and proj) for correctness check.
# ----------------------------------------------------------------------------
def reference_forward(xs, qpe, kpe, params, num_heads, eps=1e-6):
    R, N, S, D = xs.shape
    M = qpe.shape[1]
    Dh = D // num_heads
    scale = 1.0 / math.sqrt(Dh)

    def ln(z, w, b):
        mu = jnp.mean(z, -1, keepdims=True)
        var = jnp.mean((z - mu) ** 2, -1, keepdims=True)
        return (z - mu) / jnp.sqrt(var + eps) * w + b

    outs = []
    for r in range(R):
        q = ln(qpe[r], params["ln_w"][r, 0], params["ln_b"][r, 0]) @ params["w_in"][r, 0] + params["b_in"][r, 0]
        k = ln(kpe,    params["ln_w"][r, 1], params["ln_b"][r, 1]) @ params["w_in"][r, 1] + params["b_in"][r, 1]
        per_b = []
        for b in range(N):
            v = ln(xs[r, b], params["ln_w"][r, 2], params["ln_b"][r, 2]) @ params["w_in"][r, 2] + params["b_in"][r, 2]
            heads = []
            for h in range(num_heads):
                sl = slice(h * Dh, (h + 1) * Dh)
                s = (q[:, sl] * scale) @ k[:, sl].T
                pr = jax.nn.softmax(s, axis=-1)
                heads.append(pr @ v[:, sl])
            ao = jnp.concatenate(heads, -1)
            o = ao @ params["w_out"][r] + params["b_out"][r, 0]
            per_b.append(o @ params["proj"][r])
        outs.append(jnp.stack(per_b, 0))
    return jnp.concatenate(outs, axis=1)


# ----------------------------------------------------------------------------
if __name__ == "__main__":
    grid_size = 4          # num_queries = 16
    kv_dim = 32
    embed_dim = 32
    num_heads = 2
    num_resamplers = 2
    N = 2                  # batch
    tgt_size = (6, 6)
    S = tgt_size[0] * tgt_size[1]
    num_visual_tokens = 8  # -> matry_n = 4 per resampler

    key = jax.random.PRNGKey(0)
    ks = jax.random.split(key, 10)
    num_queries = grid_size ** 2

    params = {
        "query": 0.02 * jax.random.normal(ks[0], (num_resamplers, num_queries, kv_dim), jnp.float32),
        "w_in": jax.random.normal(ks[1], (num_resamplers, 3, kv_dim, kv_dim), jnp.float32) / math.sqrt(kv_dim),
        "b_in": 0.1 * jax.random.normal(ks[2], (num_resamplers, 3, kv_dim), jnp.float32),
        "w_out": 0.02 * jax.random.normal(ks[3], (num_resamplers, kv_dim, kv_dim), jnp.float32),
        "b_out": 0.1 * jax.random.normal(ks[4], (num_resamplers, 1, kv_dim), jnp.float32),
        "proj": (embed_dim ** -0.5) * jax.random.normal(ks[5], (num_resamplers, kv_dim, embed_dim), jnp.float32),
        "ln_w": 1.0 + 0.1 * jax.random.normal(ks[6], (num_resamplers, 3, kv_dim), jnp.float32),
        "ln_b": 0.05 * jax.random.normal(ks[7], (num_resamplers, 3, kv_dim), jnp.float32),
        # sincos pos_embed stored as fp16 (matches .half() in the module)
        "pos_embed_f16": get_2d_sincos_pos_embed(kv_dim, grid_size).astype(np.float16),
    }

    # Inputs: one (N, S, kv_dim) feature map per resampler.
    xs = jax.random.normal(ks[8], (num_resamplers, N, S, kv_dim), jnp.float32)

    # Prepare once per weight set (cache in real use), then run the kernel.
    prep = prepare_multi_resampler(
        params, num_visual_tokens=num_visual_tokens, tgt_size=tgt_size,
        num_heads=num_heads, grid_size=grid_size)
    out = multi_resampler_forward(xs, prep)
    out = jax.block_until_ready(out)

    M = prep["meta"]["M"]
    ref = reference_forward(xs, prep["qpe"], prep["kpe"], params, num_heads)
    assert out.shape == (N, num_resamplers * M, embed_dim), out.shape
    max_err = float(jnp.max(jnp.abs(out - ref)))
    # bf16 inputs + bf16 MXU compute with f32 accumulation -> small delta vs f32 ref.
    assert jnp.allclose(out, ref, atol=2e-2, rtol=2e-2), max_err

    print("KERNEL_OK")
</pallas_src>

<mosaic_0001>
module attributes {stable_mosaic.version = 11 : i64} {
  func.func @_resampler_kernel(%arg0: i32, %arg1: i32, %arg2: memref<1x2x8x36xbf16, #tpu.memory_space<vmem>>, %arg3: memref<1x2x36x32xbf16, #tpu.memory_space<vmem>>, %arg4: memref<1x1x32xf32, #tpu.memory_space<vmem>>, %arg5: memref<1x1x32xf32, #tpu.memory_space<vmem>>, %arg6: memref<1x32x32xbf16, #tpu.memory_space<vmem>>, %arg7: memref<1x32x128xbf16, #tpu.memory_space<vmem>>, %arg8: memref<1x1x128xf32, #tpu.memory_space<vmem>>, %arg9: memref<2x1x8x128xf32, #tpu.memory_space<vmem>>, %arg10: memref<8x32xbf16, #tpu.memory_space<vmem>>) attributes {dimension_semantics = [#tpu.dimension_semantics<arbitrary>, #tpu.dimension_semantics<parallel>], iteration_bounds = array<i64: 2, 1>, scalar_prefetch = 0 : i64, scratch_operands = 1 : i64, tpu.core_type = #tpu.core_type<tc>, window_params = [{pipeline_mode = #tpu.pipeline_mode<synchronous>, transform_indices = @transform_0, window_bounds = array<i64: 1, 2, 8, 36>}, {transform_indices = @transform_1, window_bounds = array<i64: 1, 2, 36, 32>}, {pipeline_mode = #tpu.pipeline_mode<synchronous>, transform_indices = @transform_2, window_bounds = array<i64: 1, 1, 32>}, {pipeline_mode = #tpu.pipeline_mode<synchronous>, transform_indices = @transform_3, window_bounds = array<i64: 1, 1, 32>}, {pipeline_mode = #tpu.pipeline_mode<synchronous>, transform_indices = @transform_4, window_bounds = array<i64: 1, 32, 32>}, {pipeline_mode = #tpu.pipeline_mode<synchronous>, transform_indices = @transform_5, window_bounds = array<i64: 1, 32, 128>}, {pipeline_mode = #tpu.pipeline_mode<synchronous>, transform_indices = @transform_6, window_bounds = array<i64: 1, 1, 128>}, {transform_indices = @transform_7, window_bounds = array<i64: 2, 1, 8, 128>}]} {
    %c0 = arith.constant 0 : index
    %c0_0 = arith.constant 0 : index
    %c0_1 = arith.constant 0 : index
    %0 = vector.load %arg4[%c0, %c0_0, %c0_1] : memref<1x1x32xf32, #tpu.memory_space<vmem>>, vector<1x1x32xf32>
    %1 = vector.shape_cast %0 : vector<1x1x32xf32> to vector<1x32xf32>
    %c0_2 = arith.constant 0 : index
    %c0_3 = arith.constant 0 : index
    %c0_4 = arith.constant 0 : index
    %2 = vector.load %arg5[%c0_2, %c0_3, %c0_4] : memref<1x1x32xf32, #tpu.memory_space<vmem>>, vector<1x1x32xf32>
    %3 = vector.shape_cast %2 : vector<1x1x32xf32> to vector<1x32xf32>
    %c0_5 = arith.constant 0 : index
    %c0_6 = arith.constant 0 : index
    %c0_7 = arith.constant 0 : index
    %4 = vector.load %arg8[%c0_5, %c0_6, %c0_7] : memref<1x1x128xf32, #tpu.memory_space<vmem>>, vector<1x1x128xf32>
    %5 = vector.shape_cast %4 : vector<1x1x128xf32> to vector<1x128xf32>
    %c0_i32 = arith.constant 0 : i32
    %c2_i32 = arith.constant 2 : i32
    %6 = arith.addi %c0_i32, %c2_i32 : i32
    %c1_i32 = arith.constant 1 : i32
    scf.for %arg11 = %c0_i32 to %6 step %c1_i32  : i32 {
      %c1_i32_9 = arith.constant 1 : i32
      %7 = arith.muli %arg11, %c1_i32_9 : i32
      %c0_i32_10 = arith.constant 0 : i32
      %8 = arith.addi %c0_i32_10, %7 : i32
      %c0_11 = arith.constant 0 : index
      %9 = arith.index_cast %8 : i32 to index
      %c0_12 = arith.constant 0 : index
      %c0_13 = arith.constant 0 : index
      %10 = vector.load %arg3[%c0_11, %9, %c0_12, %c0_13] : memref<1x2x36x32xbf16, #tpu.memory_space<vmem>>, vector<1x1x36x32xbf16>
      %11 = vector.shape_cast %10 : vector<1x1x36x32xbf16> to vector<36x32xbf16>
      %12 = arith.extf %11 : vector<36x32xbf16> to vector<36x32xf32>
      %cst = arith.constant dense<0.000000e+00> : vector<36xf32>
      %13 = vector.multi_reduction <add>, %12, %cst [1] : vector<36x32xf32> to vector<36xf32>
      %14 = vector.shape_cast %13 : vector<36xf32> to vector<36x1xf32>
      %cst_14 = arith.constant 3.200000e+01 : f32
      %15 = vector.broadcast %cst_14 : f32 to vector<36x1xf32>
      %16 = arith.divf %14, %15 : vector<36x1xf32>
      %17 = vector.broadcast %16 : vector<36x1xf32> to vector<36x32xf32>
      %18 = arith.subf %12, %17 : vector<36x32xf32>
      %19 = arith.mulf %18, %18 : vector<36x32xf32>
      %cst_15 = arith.constant dense<0.000000e+00> : vector<36xf32>
      %20 = vector.multi_reduction <add>, %19, %cst_15 [1] : vector<36x32xf32> to vector<36xf32>
      %21 = vector.shape_cast %20 : vector<36xf32> to vector<36x1xf32>
      %cst_16 = arith.constant 3.200000e+01 : f32
      %22 = vector.broadcast %cst_16 : f32 to vector<36x1xf32>
      %23 = arith.divf %21, %22 : vector<36x1xf32>
      %24 = vector.broadcast %16 : vector<36x1xf32> to vector<36x32xf32>
      %25 = arith.subf %12, %24 : vector<36x32xf32>
      %cst_17 = arith.constant 9.99999997E-7 : f32
      %26 = vector.broadcast %cst_17 : f32 to vector<36x1xf32>
      %27 = arith.addf %23, %26 : vector<36x1xf32>
      %28 = math.rsqrt %27 : vector<36x1xf32>
      %29 = vector.broadcast %28 : vector<36x1xf32> to vector<36x32xf32>
      %30 = arith.mulf %25, %29 : vector<36x32xf32>
      %31 = vector.broadcast %1 : vector<1x32xf32> to vector<36x32xf32>
      %32 = arith.mulf %30, %31 : vector<36x32xf32>
      %33 = vector.broadcast %3 : vector<1x32xf32> to vector<36x32xf32>
      %34 = arith.addf %32, %33 : vector<36x32xf32>
      %35 = arith.truncf %34 : vector<36x32xf32> to vector<36x32xbf16>
      %c0_18 = arith.constant 0 : index
      %c0_19 = arith.constant 0 : index
      %c0_20 = arith.constant 0 : index
      %36 = vector.load %arg6[%c0_18, %c0_19, %c0_20] : memref<1x32x32xbf16, #tpu.memory_space<vmem>>, vector<1x32x32xbf16>
      %37 = vector.shape_cast %36 : vector<1x32x32xbf16> to vector<32x32xbf16>
      %cst_21 = arith.constant dense<0.000000e+00> : vector<36x32xf32>
      %38 = tpu.matmul %35, %37, %cst_21 {dimension_numbers = #tpu.dot_dimension_numbers<[1], [0], [0], [1], [0, 0, 1, 1], [], []>} : vector<36x32xbf16>, vector<32x32xbf16>, vector<36x32xf32> -> vector<36x32xf32>
      %39 = arith.truncf %38 : vector<36x32xf32> to vector<36x32xbf16>
      %c0_22 = arith.constant 0 : index
      %c0_23 = arith.constant 0 : index
      %c0_24 = arith.constant 0 : index
      %c0_25 = arith.constant 0 : index
      %40 = vector.load %arg2[%c0_22, %c0_23, %c0_24, %c0_25] : memref<1x2x8x36xbf16, #tpu.memory_space<vmem>>, vector<1x1x8x36xbf16>
      %41 = vector.shape_cast %40 : vector<1x1x8x36xbf16> to vector<8x36xbf16>
      %42 = vector.extract_strided_slice %39 {offsets = [0, 0], sizes = [36, 16], strides = [1, 1]} : vector<36x32xbf16> to vector<36x16xbf16>
      %cst_26 = arith.constant dense<0.000000e+00> : vector<8x16xf32>
      %43 = tpu.matmul %41, %42, %cst_26 {dimension_numbers = #tpu.dot_dimension_numbers<[1], [0], [0], [1], [0, 0, 1, 1], [], []>} : vector<8x36xbf16>, vector<36x16xbf16>, vector<8x16xf32> -> vector<8x16xf32>
      %44 = arith.truncf %43 : vector<8x16xf32> to vector<8x16xbf16>
      %c0_27 = arith.constant 0 : index
      %c0_28 = arith.constant 0 : index
      %45 = vector.load %arg10[%c0_27, %c0_28] : memref<8x32xbf16, #tpu.memory_space<vmem>>, vector<8x16xbf16>
      tpu.vector_store %arg10[%c0_27, %c0_28], %44 {strides = array<i32>} : memref<8x32xbf16, #tpu.memory_space<vmem>>, vector<8x16xbf16>,
      %c0_29 = arith.constant 0 : index
      %c1 = arith.constant 1 : index
      %c0_30 = arith.constant 0 : index
      %c0_31 = arith.constant 0 : index
      %46 = vector.load %arg2[%c0_29, %c1, %c0_30, %c0_31] : memref<1x2x8x36xbf16, #tpu.memory_space<vmem>>, vector<1x1x8x36xbf16>
      %47 = vector.shape_cast %46 : vector<1x1x8x36xbf16> to vector<8x36xbf16>
      %48 = vector.extract_strided_slice %39 {offsets = [0, 16], sizes = [36, 16], strides = [1, 1]} : vector<36x32xbf16> to vector<36x16xbf16>
      %cst_32 = arith.constant dense<0.000000e+00> : vector<8x16xf32>
      %49 = tpu.matmul %47, %48, %cst_32 {dimension_numbers = #tpu.dot_dimension_numbers<[1], [0], [0], [1], [0, 0, 1, 1], [], []>} : vector<8x36xbf16>, vector<36x16xbf16>, vector<8x16xf32> -> vector<8x16xf32>
      %50 = arith.truncf %49 : vector<8x16xf32> to vector<8x16xbf16>
      %c0_33 = arith.constant 0 : index
      %c16 = arith.constant 16 : index
      %51 = vector.load %arg10[%c0_33, %c16] : memref<8x32xbf16, #tpu.memory_space<vmem>>, vector<8x16xbf16>
      tpu.vector_store %arg10[%c0_33, %c16], %50 {strides = array<i32>} : memref<8x32xbf16, #tpu.memory_space<vmem>>, vector<8x16xbf16>,
      %c0_34 = arith.constant 0 : index
      %c0_35 = arith.constant 0 : index
      %52 = vector.load %arg10[%c0_34, %c0_35] : memref<8x32xbf16, #tpu.memory_space<vmem>>, vector<8x32xbf16>
      %c0_36 = arith.constant 0 : index
      %c0_37 = arith.constant 0 : index
      %c0_38 = arith.constant 0 : index
      %53 = vector.load %arg7[%c0_36, %c0_37, %c0_38] : memref<1x32x128xbf16, #tpu.memory_space<vmem>>, vector<1x32x128xbf16>
      %54 = vector.shape_cast %53 : vector<1x32x128xbf16> to vector<32x128xbf16>
      %cst_39 = arith.constant dense<0.000000e+00> : vector<8x128xf32>
      %55 = tpu.matmul %52, %54, %cst_39 {dimension_numbers = #tpu.dot_dimension_numbers<[1], [0], [0], [1], [0, 0, 1, 1], [], []>} : vector<8x32xbf16>, vector<32x128xbf16>, vector<8x128xf32> -> vector<8x128xf32>
      %56 = vector.broadcast %5 : vector<1x128xf32> to vector<8x128xf32>
      %57 = arith.addf %55, %56 : vector<8x128xf32>
      %58 = arith.index_cast %8 : i32 to index
      %c0_40 = arith.constant 0 : index
      %c0_41 = arith.constant 0 : index
      %c0_42 = arith.constant 0 : index
      %59 = vector.load %arg9[%58, %c0_40, %c0_41, %c0_42] : memref<2x1x8x128xf32, #tpu.memory_space<vmem>>, vector<1x1x8x128xf32>
      %60 = vector.shape_cast %59 : vector<1x1x8x128xf32> to vector<8x128xf32>
      %61 = vector.shape_cast %57 : vector<8x128xf32> to vector<1x1x8x128xf32>
      tpu.vector_store %arg9[%58, %c0_40, %c0_41, %c0_42], %61 {strides = array<i32>} : memref<2x1x8x128xf32, #tpu.memory_space<vmem>>, vector<1x1x8x128xf32>,
    }
    %c2_i32_8 = arith.constant 2 : i32
    return
  }
  func.func @transform_0(%arg0: i32, %arg1: i32) -> (i32, i32, i32, i32) {
    %c0_i32 = arith.constant 0 : i32
    %c0_i32_0 = arith.constant 0 : i32
    %c0_i32_1 = arith.constant 0 : i32
    %c0_i32_2 = arith.constant 0 : i32
    return %arg0, %c0_i32, %c0_i32_0, %c0_i32_1 : i32, i32, i32, i32
  }
  func.func @transform_1(%arg0: i32, %arg1: i32) -> (i32, i32, i32, i32) {
    %c0_i32 = arith.constant 0 : i32
    %c0_i32_0 = arith.constant 0 : i32
    %c0_i32_1 = arith.constant 0 : i32
    return %arg0, %arg1, %c0_i32, %c0_i32_0 : i32, i32, i32, i32
  }
  func.func @transform_2(%arg0: i32, %arg1: i32) -> (i32, i32, i32) {
    %c0_i32 = arith.constant 0 : i32
    %c0_i32_0 = arith.constant 0 : i32
    %c0_i32_1 = arith.constant 0 : i32
    return %arg0, %c0_i32, %c0_i32_0 : i32, i32, i32
  }
  func.func @transform_3(%arg0: i32, %arg1: i32) -> (i32, i32, i32) {
    %c0_i32 = arith.constant 0 : i32
    %c0_i32_0 = arith.constant 0 : i32
    %c0_i32_1 = arith.constant 0 : i32
    return %arg0, %c0_i32, %c0_i32_0 : i32, i32, i32
  }
  func.func @transform_4(%arg0: i32, %arg1: i32) -> (i32, i32, i32) {
    %c0_i32 = arith.constant 0 : i32
    %c0_i32_0 = arith.constant 0 : i32
    %c0_i32_1 = arith.constant 0 : i32
    return %arg0, %c0_i32, %c0_i32_0 : i32, i32, i32
  }
  func.func @transform_5(%arg0: i32, %arg1: i32) -> (i32, i32, i32) {
    %c0_i32 = arith.constant 0 : i32
    %c0_i32_0 = arith.constant 0 : i32
    %c0_i32_1 = arith.constant 0 : i32
    return %arg0, %c0_i32, %c0_i32_0 : i32, i32, i32
  }
  func.func @transform_6(%arg0: i32, %arg1: i32) -> (i32, i32, i32) {
    %c0_i32 = arith.constant 0 : i32
    %c0_i32_0 = arith.constant 0 : i32
    %c0_i32_1 = arith.constant 0 : i32
    return %arg0, %c0_i32, %c0_i32_0 : i32, i32, i32
  }
  func.func @transform_7(%arg0: i32, %arg1: i32) -> (i32, i32, i32, i32) {
    %c0_i32 = arith.constant 0 : i32
    %c0_i32_0 = arith.constant 0 : i32
    %c0_i32_1 = arith.constant 0 : i32
    return %arg1, %arg0, %c0_i32, %c0_i32_0 : i32, i32, i32, i32
  }
}

module attributes {stable_mosaic.version = 11 : i64} {
  func.func @_resampler_kernel(%arg0: i32, %arg1: i32, %arg2: memref<1x2x8x36xbf16, #tpu.memory_space<vmem>>, %arg3: memref<1x2x36x32xbf16, #tpu.memory_space<vmem>>, %arg4: memref<1x1x32xf32, #tpu.memory_space<vmem>>, %arg5: memref<1x1x32xf32, #tpu.memory_space<vmem>>, %arg6: memref<1x32x32xbf16, #tpu.memory_space<vmem>>, %arg7: memref<1x32x128xbf16, #tpu.memory_space<vmem>>, %arg8: memref<1x1x128xf32, #tpu.memory_space<vmem>>, %arg9: memref<2x1x8x128xf32, #tpu.memory_space<vmem>>, %arg10: memref<8x32xbf16, #tpu.memory_space<vmem>>) attributes {dimension_semantics = [#tpu.dimension_semantics<arbitrary>, #tpu.dimension_semantics<parallel>], iteration_bounds = array<i64: 2, 1>, scalar_prefetch = 0 : i64, scratch_operands = 1 : i64, tpu.core_type = #tpu.core_type<tc>, window_params = [{transform_indices = @transform_0, window_bounds = array<i64: 1, 2, 8, 36>}, {transform_indices = @transform_1, window_bounds = array<i64: 1, 2, 36, 32>}, {transform_indices = @transform_2, window_bounds = array<i64: 1, 1, 32>}, {transform_indices = @transform_3, window_bounds = array<i64: 1, 1, 32>}, {transform_indices = @transform_4, window_bounds = array<i64: 1, 32, 32>}, {transform_indices = @transform_5, window_bounds = array<i64: 1, 32, 128>}, {transform_indices = @transform_6, window_bounds = array<i64: 1, 1, 128>}, {transform_indices = @transform_7, window_bounds = array<i64: 2, 1, 8, 128>}]} {
    %c0 = arith.constant 0 : index
    %c0_0 = arith.constant 0 : index
    %c0_1 = arith.constant 0 : index
    %0 = vector.load %arg4[%c0, %c0_0, %c0_1] : memref<1x1x32xf32, #tpu.memory_space<vmem>>, vector<1x1x32xf32>
    %1 = vector.shape_cast %0 : vector<1x1x32xf32> to vector<1x32xf32>
    %c0_2 = arith.constant 0 : index
    %c0_3 = arith.constant 0 : index
    %c0_4 = arith.constant 0 : index
    %2 = vector.load %arg5[%c0_2, %c0_3, %c0_4] : memref<1x1x32xf32, #tpu.memory_space<vmem>>, vector<1x1x32xf32>
    %3 = vector.shape_cast %2 : vector<1x1x32xf32> to vector<1x32xf32>
    %c0_5 = arith.constant 0 : index
    %c0_6 = arith.constant 0 : index
    %c0_7 = arith.constant 0 : index
    %4 = vector.load %arg8[%c0_5, %c0_6, %c0_7] : memref<1x1x128xf32, #tpu.memory_space<vmem>>, vector<1x1x128xf32>
    %5 = vector.shape_cast %4 : vector<1x1x128xf32> to vector<1x128xf32>
    %c0_i32 = arith.constant 0 : i32
    %c2_i32 = arith.constant 2 : i32
    %6 = arith.addi %c0_i32, %c2_i32 : i32
    %c1_i32 = arith.constant 1 : i32
    scf.for %arg11 = %c0_i32 to %6 step %c1_i32  : i32 {
      %c1_i32_9 = arith.constant 1 : i32
      %7 = arith.muli %arg11, %c1_i32_9 : i32
      %c0_i32_10 = arith.constant 0 : i32
      %8 = arith.addi %c0_i32_10, %7 : i32
      %c0_11 = arith.constant 0 : index
      %9 = arith.index_cast %8 : i32 to index
      %c0_12 = arith.constant 0 : index
      %c0_13 = arith.constant 0 : index
      %10 = vector.load %arg3[%c0_11, %9, %c0_12, %c0_13] : memref<1x2x36x32xbf16, #tpu.memory_space<vmem>>, vector<1x1x36x32xbf16>
      %11 = vector.shape_cast %10 : vector<1x1x36x32xbf16> to vector<36x32xbf16>
      %12 = arith.extf %11 : vector<36x32xbf16> to vector<36x32xf32>
      %cst = arith.constant dense<0.000000e+00> : vector<36xf32>
      %13 = vector.multi_reduction <add>, %12, %cst [1] : vector<36x32xf32> to vector<36xf32>
      %14 = vector.shape_cast %13 : vector<36xf32> to vector<36x1xf32>
      %cst_14 = arith.constant 3.200000e+01 : f32
      %15 = vector.broadcast %cst_14 : f32 to vector<36x1xf32>
      %16 = arith.divf %14, %15 : vector<36x1xf32>
      %17 = vector.broadcast %16 : vector<36x1xf32> to vector<36x32xf32>
      %18 = arith.subf %12, %17 : vector<36x32xf32>
      %19 = arith.mulf %18, %18 : vector<36x32xf32>
      %cst_15 = arith.constant dense<0.000000e+00> : vector<36xf32>
      %20 = vector.multi_reduction <add>, %19, %cst_15 [1] : vector<36x32xf32> to vector<36xf32>
      %21 = vector.shape_cast %20 : vector<36xf32> to vector<36x1xf32>
      %cst_16 = arith.constant 3.200000e+01 : f32
      %22 = vector.broadcast %cst_16 : f32 to vector<36x1xf32>
      %23 = arith.divf %21, %22 : vector<36x1xf32>
      %24 = vector.broadcast %16 : vector<36x1xf32> to vector<36x32xf32>
      %25 = arith.subf %12, %24 : vector<36x32xf32>
      %cst_17 = arith.constant 9.99999997E-7 : f32
      %26 = vector.broadcast %cst_17 : f32 to vector<36x1xf32>
      %27 = arith.addf %23, %26 : vector<36x1xf32>
      %28 = math.rsqrt %27 : vector<36x1xf32>
      %29 = vector.broadcast %28 : vector<36x1xf32> to vector<36x32xf32>
      %30 = arith.mulf %25, %29 : vector<36x32xf32>
      %31 = vector.broadcast %1 : vector<1x32xf32> to vector<36x32xf32>
      %32 = arith.mulf %30, %31 : vector<36x32xf32>
      %33 = vector.broadcast %3 : vector<1x32xf32> to vector<36x32xf32>
      %34 = arith.addf %32, %33 : vector<36x32xf32>
      %35 = arith.truncf %34 : vector<36x32xf32> to vector<36x32xbf16>
      %c0_18 = arith.constant 0 : index
      %c0_19 = arith.constant 0 : index
      %c0_20 = arith.constant 0 : index
      %36 = vector.load %arg6[%c0_18, %c0_19, %c0_20] : memref<1x32x32xbf16, #tpu.memory_space<vmem>>, vector<1x32x32xbf16>
      %37 = vector.shape_cast %36 : vector<1x32x32xbf16> to vector<32x32xbf16>
      %cst_21 = arith.constant dense<0.000000e+00> : vector<36x32xf32>
      %38 = tpu.matmul %35, %37, %cst_21 {dimension_numbers = #tpu.dot_dimension_numbers<[1], [0], [0], [1], [0, 0, 1, 1], [], []>} : vector<36x32xbf16>, vector<32x32xbf16>, vector<36x32xf32> -> vector<36x32xf32>
      %39 = arith.truncf %38 : vector<36x32xf32> to vector<36x32xbf16>
      %c0_22 = arith.constant 0 : index
      %c0_23 = arith.constant 0 : index
      %c0_24 = arith.constant 0 : index
      %c0_25 = arith.constant 0 : index
      %40 = vector.load %arg2[%c0_22, %c0_23, %c0_24, %c0_25] : memref<1x2x8x36xbf16, #tpu.memory_space<vmem>>, vector<1x1x8x36xbf16>
      %41 = vector.shape_cast %40 : vector<1x1x8x36xbf16> to vector<8x36xbf16>
      %42 = vector.extract_strided_slice %39 {offsets = [0, 0], sizes = [36, 16], strides = [1, 1]} : vector<36x32xbf16> to vector<36x16xbf16>
      %cst_26 = arith.constant dense<0.000000e+00> : vector<8x16xf32>
      %43 = tpu.matmul %41, %42, %cst_26 {dimension_numbers = #tpu.dot_dimension_numbers<[1], [0], [0], [1], [0, 0, 1, 1], [], []>} : vector<8x36xbf16>, vector<36x16xbf16>, vector<8x16xf32> -> vector<8x16xf32>
      %44 = arith.truncf %43 : vector<8x16xf32> to vector<8x16xbf16>
      %c0_27 = arith.constant 0 : index
      %c0_28 = arith.constant 0 : index
      %45 = vector.load %arg10[%c0_27, %c0_28] : memref<8x32xbf16, #tpu.memory_space<vmem>>, vector<8x16xbf16>
      tpu.vector_store %arg10[%c0_27, %c0_28], %44 {strides = array<i32>} : memref<8x32xbf16, #tpu.memory_space<vmem>>, vector<8x16xbf16>,
      %c0_29 = arith.constant 0 : index
      %c1 = arith.constant 1 : index
      %c0_30 = arith.constant 0 : index
      %c0_31 = arith.constant 0 : index
      %46 = vector.load %arg2[%c0_29, %c1, %c0_30, %c0_31] : memref<1x2x8x36xbf16, #tpu.memory_space<vmem>>, vector<1x1x8x36xbf16>
      %47 = vector.shape_cast %46 : vector<1x1x8x36xbf16> to vector<8x36xbf16>
      %48 = vector.extract_strided_slice %39 {offsets = [0, 16], sizes = [36, 16], strides = [1, 1]} : vector<36x32xbf16> to vector<36x16xbf16>
      %cst_32 = arith.constant dense<0.000000e+00> : vector<8x16xf32>
      %49 = tpu.matmul %47, %48, %cst_32 {dimension_numbers = #tpu.dot_dimension_numbers<[1], [0], [0], [1], [0, 0, 1, 1], [], []>} : vector<8x36xbf16>, vector<36x16xbf16>, vector<8x16xf32> -> vector<8x16xf32>
      %50 = arith.truncf %49 : vector<8x16xf32> to vector<8x16xbf16>
      %c0_33 = arith.constant 0 : index
      %c16 = arith.constant 16 : index
      %51 = vector.load %arg10[%c0_33, %c16] : memref<8x32xbf16, #tpu.memory_space<vmem>>, vector<8x16xbf16>
      tpu.vector_store %arg10[%c0_33, %c16], %50 {strides = array<i32>} : memref<8x32xbf16, #tpu.memory_space<vmem>>, vector<8x16xbf16>,
      %c0_34 = arith.constant 0 : index
      %c0_35 = arith.constant 0 : index
      %52 = vector.load %arg10[%c0_34, %c0_35] : memref<8x32xbf16, #tpu.memory_space<vmem>>, vector<8x32xbf16>
      %c0_36 = arith.constant 0 : index
      %c0_37 = arith.constant 0 : index
      %c0_38 = arith.constant 0 : index
      %53 = vector.load %arg7[%c0_36, %c0_37, %c0_38] : memref<1x32x128xbf16, #tpu.memory_space<vmem>>, vector<1x32x128xbf16>
      %54 = vector.shape_cast %53 : vector<1x32x128xbf16> to vector<32x128xbf16>
      %cst_39 = arith.constant dense<0.000000e+00> : vector<8x128xf32>
      %55 = tpu.matmul %52, %54, %cst_39 {dimension_numbers = #tpu.dot_dimension_numbers<[1], [0], [0], [1], [0, 0, 1, 1], [], []>} : vector<8x32xbf16>, vector<32x128xbf16>, vector<8x128xf32> -> vector<8x128xf32>
      %56 = vector.broadcast %5 : vector<1x128xf32> to vector<8x128xf32>
      %57 = arith.addf %55, %56 : vector<8x128xf32>
      %58 = arith.index_cast %8 : i32 to index
      %c0_40 = arith.constant 0 : index
      %c0_41 = arith.constant 0 : index
      %c0_42 = arith.constant 0 : index
      %59 = vector.load %arg9[%58, %c0_40, %c0_41, %c0_42] : memref<2x1x8x128xf32, #tpu.memory_space<vmem>>, vector<1x1x8x128xf32>
      %60 = vector.shape_cast %59 : vector<1x1x8x128xf32> to vector<8x128xf32>
      %61 = vector.shape_cast %57 : vector<8x128xf32> to vector<1x1x8x128xf32>
      tpu.vector_store %arg9[%58, %c0_40, %c0_41, %c0_42], %61 {strides = array<i32>} : memref<2x1x8x128xf32, #tpu.memory_space<vmem>>, vector<1x1x8x128xf32>,
    }
    %c2_i32_8 = arith.constant 2 : i32
    return
  }
  func.func @transform_0(%arg0: i32, %arg1: i32) -> (i32, i32, i32, i32) {
    %c0_i32 = arith.constant 0 : i32
    %c0_i32_0 = arith.constant 0 : i32
    %c0_i32_1 = arith.constant 0 : i32
    %c0_i32_2 = arith.constant 0 : i32
    return %arg0, %c0_i32, %c0_i32_0, %c0_i32_1 : i32, i32, i32, i32
  }
  func.func @transform_1(%arg0: i32, %arg1: i32) -> (i32, i32, i32, i32) {
    %c0_i32 = arith.constant 0 : i32
    %c0_i32_0 = arith.constant 0 : i32
    %c0_i32_1 = arith.constant 0 : i32
    return %arg0, %arg1, %c0_i32, %c0_i32_0 : i32, i32, i32, i32
  }
  func.func @transform_2(%arg0: i32, %arg1: i32) -> (i32, i32, i32) {
    %c0_i32 = arith.constant 0 : i32
    %c0_i32_0 = arith.constant 0 : i32
    %c0_i32_1 = arith.constant 0 : i32
    return %arg0, %c0_i32, %c0_i32_0 : i32, i32, i32
  }
  func.func @transform_3(%arg0: i32, %arg1: i32) -> (i32, i32, i32) {
    %c0_i32 = arith.constant 0 : i32
    %c0_i32_0 = arith.constant 0 : i32
    %c0_i32_1 = arith.constant 0 : i32
    return %arg0, %c0_i32, %c0_i32_0 : i32, i32, i32
  }
  func.func @transform_4(%arg0: i32, %arg1: i32) -> (i32, i32, i32) {
    %c0_i32 = arith.constant 0 : i32
    %c0_i32_0 = arith.constant 0 : i32
    %c0_i32_1 = arith.constant 0 : i32
    return %arg0, %c0_i32, %c0_i32_0 : i32, i32, i32
  }
  func.func @transform_5(%arg0: i32, %arg1: i32) -> (i32, i32, i32) {
    %c0_i32 = arith.constant 0 : i32
    %c0_i32_0 = arith.constant 0 : i32
    %c0_i32_1 = arith.constant 0 : i32
    return %arg0, %c0_i32, %c0_i32_0 : i32, i32, i32
  }
  func.func @transform_6(%arg0: i32, %arg1: i32) -> (i32, i32, i32) {
    %c0_i32 = arith.constant 0 : i32
    %c0_i32_0 = arith.constant 0 : i32
    %c0_i32_1 = arith.constant 0 : i32
    return %arg0, %c0_i32, %c0_i32_0 : i32, i32, i32
  }
  func.func @transform_7(%arg0: i32, %arg1: i32) -> (i32, i32, i32, i32) {
    %c0_i32 = arith.constant 0 : i32
    %c0_i32_0 = arith.constant 0 : i32
    %c0_i32_1 = arith.constant 0 : i32
    return %arg1, %arg0, %c0_i32, %c0_i32_0 : i32, i32, i32, i32
  }
}

</mosaic_0001>

<llo_original>
// kernel: tpu_custom_call.1
$region0: #{tpu_custom_call.1}
  #allocation0 [shape = 'u32[]', space=smem, size = 0x4, offset = 0x4, fixed_abs, tag = 'smem constant byte address 0x4 - core index']
  #allocation1 [shape = 'u32[144,128]{1,0:T(1,128)}', space=vmem, size = 0x12000, scoped, tag = 'internal scratch']
  #allocation2 [shape = 'bf16[8,32]{1,0:T(8,128)(2,1)}', space=vmem, size = 0x800, scoped, tag = 'scratch operand']
  %s0 = inlined_call_operand.vmem [shape: bf16[2,2,8,36], index: 0, kind: input, shape index: {}]
  %s1 = inlined_call_operand.vmem [shape: bf16[2,2,36,32], index: 1, kind: input, shape index: {}]
  %s2 = inlined_call_operand.vmem [shape: f32[2,1,32], index: 2, kind: input, shape index: {}]
  %s3 = inlined_call_operand.vmem [shape: f32[2,1,32], index: 3, kind: input, shape index: {}]
  %s4 = inlined_call_operand.vmem [shape: bf16[2,32,32], index: 4, kind: input, shape index: {}]
  %s5 = inlined_call_operand.vmem [shape: bf16[2,32,128], index: 5, kind: input, shape index: {}]
  %s6 = inlined_call_operand.vmem [shape: f32[2,1,128], index: 6, kind: input, shape index: {}]
  %s7 = inlined_call_operand.hbm [shape: f32[2,2,8,128], index: 7, kind: output, shape index: {}]
  %s8 = sld [smem:[#allocation0]]
  $region68: #{tpu_custom_call.1} parent=0
    _
  %s10 = ssub.s32 1, %s8
  %s11 = scalar_select 0, %s10, %s8
  $region1: #{tpu_custom_call.1} parent=0
    #allocation3 [shape = 'u8[16384]{0}', space=vmem, size = 0x4000, scoped, tag = 'output window, operand 0']
    #allocation4 [shape = 's32[2]{0}', space=sflag, size = 0x8, scoped, tag = 'scoped memory for tpu_custom_call.1']
    %12 = vsyncpa [#allocation4], 0
    %s13 = scalar_lea.sflag [#allocation4], 1
    %14 = vsyncpa %s13, 0
    loop: start=0, step=1, limit=4
    $region2: #{tpu_custom_call.1} parent=1 // loop_pre_header
      _
    $region3: #{tpu_custom_call.1} parent=1 // loop_header
      %s16 = sphi 0, %s20
      %p17 = scmp.ge.s32.totalorder %s16, 4
      %s23 = sphi 0, %s35
      %s24 = sphi 0, %s31
      %s25 = sphi 0, %s23
      %s26 = sphi 0, %s24
      %s27 = sphi 0, %s25
      %s28 = sphi 0, %s26
      %s38 = sphi 0, %s40
      %s41 = sphi 0, %s38
      %s42 = sphi 0, %s41
      %s58 = sphi 0, %s42
      %s66 = sphi 0, %s68
      %s69 = sphi 0, %s66
      %s70 = sphi 0, %s69
      %s86 = sphi 0, %s70
      %s92 = sphi 0, %s94
      %s95 = sphi 0, %s92
      %s96 = sphi 0, %s95
      %s112 = sphi 0, %s96
      %s118 = sphi 0, %s120
      %s121 = sphi 0, %s118
      %s122 = sphi 0, %s121
      %s138 = sphi 0, %s122
      %s144 = sphi 0, %s146
      %s147 = sphi 0, %s144
      %s148 = sphi 0, %s147
      %s164 = sphi 0, %s148
      %s170 = sphi 0, %s172
      %s173 = sphi 0, %s170
      %s174 = sphi 0, %s173
      %s190 = sphi 0, %s174
      %s196 = sphi 0, %s198
      %s199 = sphi 0, %s196
      %s200 = sphi 0, %s199
      %s216 = sphi 0, %s200
      %s224 = sphi 0, %s226
      %s227 = sphi 0, %s224
      %s228 = sphi 0, %s227
      %s244 = sphi 0, %s228
    $region4: #{tpu_custom_call.1} parent=1 // loop_header_branch
      %19 = sbr.rel (%p17) target = $region8
    $region5: #{tpu_custom_call.1} parent=1 // loop_body
      %s21 = ssub.s32 %s16, 1
      %s22 = ssub.s32 %s16, 2
      %s29 = sadd.s32 1, %s24
      %p30 = scmp.ge.s32.totalorder %s29, 1
      %s31 = scalar_select %p30, 0, %s29
      %s32 = sadd.s32 1, %s23
      %s33 = scalar_select %p30, %s32, %s23
      %p34 = scmp.ge.s32.totalorder %s33, 2
      %s35 = scalar_select %p34, 0, %s33
      %s36 = ssub.s32 %s23, %s35
      %p37 = scmp.eq.s32.totalorder %s36, 0
      %s39 = sadd.s32 %s38, 1
      %s40 = scalar_select %p37, %s38, %s39
      %p43 = pneg %p37
      %p44 = scmp.eq.s32.totalorder %s16, 1
      %p45 = por %p43, %p44
      %p46 = scmp.ne.s32.totalorder %s38, %s41
      %p47 = scmp.eq.s32.totalorder %s16, 0
      %p48 = por %p46, %p47
      %p49 = scmp.ne.s32.totalorder %s38, %s41
      %p50 = scmp.eq.s32.totalorder %s21, 1
      %p51 = por %p49, %p50
      %p52 = scmp.ne.s32.totalorder %s41, %s42
      %p53 = scmp.eq.s32.totalorder %s21, 0
      %p54 = por %p52, %p53
      %p55 = scmp.ne.s32.totalorder %s41, %s42
      %p56 = scmp.eq.s32.totalorder %s22, 1
      %p57 = por %p55, %p56
      %p59 = scmp.ne.s32.totalorder %s42, %s58
      %p60 = scmp.eq.s32.totalorder %s22, 0
      %p61 = por %p59, %p60
      %s62 = ssub.s32 %s23, %s35
      %s63 = ssub.s32 %s24, %s31
      %s64 = sor.u32 %s62, %s63
      %p65 = scmp.eq.s32.totalorder %s64, 0
      %s67 = sadd.s32 %s66, 1
      %s68 = scalar_select %p65, %s66, %s67
      %p71 = pneg %p65
      %p72 = scmp.eq.s32.totalorder %s16, 1
      %p73 = por %p71, %p72
      %p74 = scmp.ne.s32.totalorder %s66, %s69
      %p75 = scmp.eq.s32.totalorder %s16, 0
      %p76 = por %p74, %p75
      %p77 = scmp.ne.s32.totalorder %s66, %s69
      %p78 = scmp.eq.s32.totalorder %s21, 1
      %p79 = por %p77, %p78
      %p80 = scmp.ne.s32.totalorder %s69, %s70
      %p81 = scmp.eq.s32.totalorder %s21, 0
      %p82 = por %p80, %p81
      %p83 = scmp.ne.s32.totalorder %s69, %s70
      %p84 = scmp.eq.s32.totalorder %s22, 1
      %p85 = por %p83, %p84
      %p87 = scmp.ne.s32.totalorder %s70, %s86
      %p88 = scmp.eq.s32.totalorder %s22, 0
      %p89 = por %p87, %p88
      %s90 = ssub.s32 %s23, %s35
      %p91 = scmp.eq.s32.totalorder %s90, 0
      %s93 = sadd.s32 %s92, 1
      %s94 = scalar_select %p91, %s92, %s93
      %p97 = pneg %p91
      %p98 = scmp.eq.s32.totalorder %s16, 1
      %p99 = por %p97, %p98
      %p100 = scmp.ne.s32.totalorder %s92, %s95
      %p101 = scmp.eq.s32.totalorder %s16, 0
      %p102 = por %p100, %p101
      %p103 = scmp.ne.s32.totalorder %s92, %s95
      %p104 = scmp.eq.s32.totalorder %s21, 1
      %p105 = por %p103, %p104
      %p106 = scmp.ne.s32.totalorder %s95, %s96
      %p107 = scmp.eq.s32.totalorder %s21, 0
      %p108 = por %p106, %p107
      %p109 = scmp.ne.s32.totalorder %s95, %s96
      %p110 = scmp.eq.s32.totalorder %s22, 1
      %p111 = por %p109, %p110
      %p113 = scmp.ne.s32.totalorder %s96, %s112
      %p114 = scmp.eq.s32.totalorder %s22, 0
      %p115 = por %p113, %p114
      %s116 = ssub.s32 %s23, %s35
      %p117 = scmp.eq.s32.totalorder %s116, 0
      %s119 = sadd.s32 %s118, 1
      %s120 = scalar_select %p117, %s118, %s119
      %p123 = pneg %p117
      %p124 = scmp.eq.s32.totalorder %s16, 1
      %p125 = por %p123, %p124
      %p126 = scmp.ne.s32.totalorder %s118, %s121
      %p127 = scmp.eq.s32.totalorder %s16, 0
      %p128 = por %p126, %p127
      %p129 = scmp.ne.s32.totalorder %s118, %s121
      %p130 = scmp.eq.s32.totalorder %s21, 1
      %p131 = por %p129, %p130
      %p132 = scmp.ne.s32.totalorder %s121, %s122
      %p133 = scmp.eq.s32.totalorder %s21, 0
      %p134 = por %p132, %p133
      %p135 = scmp.ne.s32.totalorder %s121, %s122
      %p136 = scmp.eq.s32.totalorder %s22, 1
      %p137 = por %p135, %p136
      %p139 = scmp.ne.s32.totalorder %s122, %s138
      %p140 = scmp.eq.s32.totalorder %s22, 0
      %p141 = por %p139, %p140
      %s142 = ssub.s32 %s23, %s35
      %p143 = scmp.eq.s32.totalorder %s142, 0
      %s145 = sadd.s32 %s144, 1
      %s146 = scalar_select %p143, %s144, %s145
      %p149 = pneg %p143
      %p150 = scmp.eq.s32.totalorder %s16, 1
      %p151 = por %p149, %p150
      %p152 = scmp.ne.s32.totalorder %s144, %s147
      %p153 = scmp.eq.s32.totalorder %s16, 0
      %p154 = por %p152, %p153
      %p155 = scmp.ne.s32.totalorder %s144, %s147
      %p156 = scmp.eq.s32.totalorder %s21, 1
      %p157 = por %p155, %p156
      %p158 = scmp.ne.s32.totalorder %s147, %s148
      %p159 = scmp.eq.s32.totalorder %s21, 0
      %p160 = por %p158, %p159
      %p161 = scmp.ne.s32.totalorder %s147, %s148
      %p162 = scmp.eq.s32.totalorder %s22, 1
      %p163 = por %p161, %p162
      %p165 = scmp.ne.s32.totalorder %s148, %s164
      %p166 = scmp.eq.s32.totalorder %s22, 0
      %p167 = por %p165, %p166
      %s168 = ssub.s32 %s23, %s35
      %p169 = scmp.eq.s32.totalorder %s168, 0
      %s171 = sadd.s32 %s170, 1
      %s172 = scalar_select %p169, %s170, %s171
      %p175 = pneg %p169
      %p176 = scmp.eq.s32.totalorder %s16, 1
      %p177 = por %p175, %p176
      %p178 = scmp.ne.s32.totalorder %s170, %s173
      %p179 = scmp.eq.s32.totalorder %s16, 0
      %p180 = por %p178, %p179
      %p181 = scmp.ne.s32.totalorder %s170, %s173
      %p182 = scmp.eq.s32.totalorder %s21, 1
      %p183 = por %p181, %p182
      %p184 = scmp.ne.s32.totalorder %s173, %s174
      %p185 = scmp.eq.s32.totalorder %s21, 0
      %p186 = por %p184, %p185
      %p187 = scmp.ne.s32.totalorder %s173, %s174
      %p188 = scmp.eq.s32.totalorder %s22, 1
      %p189 = por %p187, %p188
      %p191 = scmp.ne.s32.totalorder %s174, %s190
      %p192 = scmp.eq.s32.totalorder %s22, 0
      %p193 = por %p191, %p192
      %s194 = ssub.s32 %s23, %s35
      %p195 = scmp.eq.s32.totalorder %s194, 0
      %s197 = sadd.s32 %s196, 1
      %s198 = scalar_select %p195, %s196, %s197
      %p201 = pneg %p195
      %p202 = scmp.eq.s32.totalorder %s16, 1
      %p203 = por %p201, %p202
      %p204 = scmp.ne.s32.totalorder %s196, %s199
      %p205 = scmp.eq.s32.totalorder %s16, 0
      %p206 = por %p204, %p205
      %p207 = scmp.ne.s32.totalorder %s196, %s199
      %p208 = scmp.eq.s32.totalorder %s21, 1
      %p209 = por %p207, %p208
      %p210 = scmp.ne.s32.totalorder %s199, %s200
      %p211 = scmp.eq.s32.totalorder %s21, 0
      %p212 = por %p210, %p211
      %p213 = scmp.ne.s32.totalorder %s199, %s200
      %p214 = scmp.eq.s32.totalorder %s22, 1
      %p215 = por %p213, %p214
      %p217 = scmp.ne.s32.totalorder %s200, %s216
      %p218 = scmp.eq.s32.totalorder %s22, 0
      %p219 = por %p217, %p218
      %s220 = ssub.s32 %s24, %s31
      %s221 = ssub.s32 %s23, %s35
      %s222 = sor.u32 %s220, %s221
      %p223 = scmp.eq.s32.totalorder %s222, 0
      %s225 = sadd.s32 %s224, 1
      %s226 = scalar_select %p223, %s224, %s225
      %p229 = pneg %p223
      %p230 = scmp.eq.s32.totalorder %s16, 1
      %p231 = por %p229, %p230
      %p232 = scmp.ne.s32.totalorder %s224, %s227
      %p233 = scmp.eq.s32.totalorder %s16, 0
      %p234 = por %p232, %p233
      %p235 = scmp.ne.s32.totalorder %s224, %s227
      %p236 = scmp.eq.s32.totalorder %s21, 1
      %p237 = por %p235, %p236
      %p238 = scmp.ne.s32.totalorder %s227, %s228
      %p239 = scmp.eq.s32.totalorder %s21, 0
      %p240 = por %p238, %p239
      %p241 = scmp.ne.s32.totalorder %s227, %s228
      %p242 = scmp.eq.s32.totalorder %s22, 1
      %p243 = por %p241, %p242
      %p245 = scmp.ne.s32.totalorder %s228, %s244
      %p246 = scmp.eq.s32.totalorder %s22, 0
      %p247 = por %p245, %p246
      %p248 = scmp.le.s32.totalorder 1, %s16
      %p249 = scmp.lt.s32.totalorder %s16, 3
      %p250 = pnand %p248, %p249
      %p251 = pneg %p250
      // Predicated region
      $region9: #{tpu_custom_call.1} parent=5 // pred_check
        _
      $region10: #{tpu_custom_call.1} parent=5 // pred_check_branch
        %253 = sbr.rel (%p250) target = $region12
      $region11: #{tpu_custom_call.1} parent=5 // pred_region
        %s254 = ssub.s32 %s16, 1
        // Predicated region
        $region13: #{tpu_custom_call.1} parent=11 // pred_check
          %p255 = pneg %p54
        $region14: #{tpu_custom_call.1} parent=11 // pred_check_branch
          %257 = sbr.rel (%p255) target = $region16
        $region15: #{tpu_custom_call.1} parent=11 // pred_region
          %p258 = scmp.lt.s32.totalorder %s25, 1
          %s259 = scalar_select %p258, %s25, 1
          %s260 = smul.addr %s259, 2
          %s261 = smul.addr %s260, 4
          %s262 = scalar_lea.vmem %s0, %s261
        $region16: #{tpu_custom_call.1} parent=11 // pred_fallthru
          _
        // Predicated region
        $region17: #{tpu_custom_call.1} parent=11 // pred_check
          %p263 = pneg %p108
        $region18: #{tpu_custom_call.1} parent=11 // pred_check_branch
          %265 = sbr.rel (%p263) target = $region20
        $region19: #{tpu_custom_call.1} parent=11 // pred_region
          %p266 = scmp.lt.s32.totalorder %s25, 1
          %s267 = scalar_select %p266, %s25, 1
          %s268 = scalar_lea.vmem %s2, %s267
        $region20: #{tpu_custom_call.1} parent=11 // pred_fallthru
          _
        // Predicated region
        $region21: #{tpu_custom_call.1} parent=11 // pred_check
          %p269 = pneg %p134
        $region22: #{tpu_custom_call.1} parent=11 // pred_check_branch
          %271 = sbr.rel (%p269) target = $region24
        $region23: #{tpu_custom_call.1} parent=11 // pred_region
          %p272 = scmp.lt.s32.totalorder %s25, 1
          %s273 = scalar_select %p272, %s25, 1
          %s274 = scalar_lea.vmem %s3, %s273
        $region24: #{tpu_custom_call.1} parent=11 // pred_fallthru
          _
        // Predicated region
        $region25: #{tpu_custom_call.1} parent=11 // pred_check
          %p275 = pneg %p160
        $region26: #{tpu_custom_call.1} parent=11 // pred_check_branch
          %277 = sbr.rel (%p275) target = $region28
        $region27: #{tpu_custom_call.1} parent=11 // pred_region
          %p278 = scmp.lt.s32.totalorder %s25, 1
          %s279 = scalar_select %p278, %s25, 1
          %s280 = smul.addr %s279, 4
          %s281 = smul.addr %s280, 4
          %s282 = scalar_lea.vmem %s4, %s281
        $region28: #{tpu_custom_call.1} parent=11 // pred_fallthru
          _
        // Predicated region
        $region29: #{tpu_custom_call.1} parent=11 // pred_check
          %p283 = pneg %p186
        $region30: #{tpu_custom_call.1} parent=11 // pred_check_branch
          %285 = sbr.rel (%p283) target = $region32
        $region31: #{tpu_custom_call.1} parent=11 // pred_region
          %p286 = scmp.lt.s32.totalorder %s25, 1
          %s287 = scalar_select %p286, %s25, 1
          %s288 = smul.addr %s287, 4
          %s289 = smul.addr %s288, 4
          %s290 = scalar_lea.vmem %s5, %s289
        $region32: #{tpu_custom_call.1} parent=11 // pred_fallthru
          _
        // Predicated region
        $region33: #{tpu_custom_call.1} parent=11 // pred_check
          %p291 = pneg %p212
        $region34: #{tpu_custom_call.1} parent=11 // pred_check_branch
          %293 = sbr.rel (%p291) target = $region36
        $region35: #{tpu_custom_call.1} parent=11 // pred_region
          %p294 = scmp.lt.s32.totalorder %s25, 1
          %s295 = scalar_select %p294, %s25, 1
          %s296 = scalar_lea.vmem %s6, %s295
        $region36: #{tpu_custom_call.1} parent=11 // pred_fallthru
          _
      $region12: #{tpu_custom_call.1} parent=5 // pred_fallthru
        _
      %p297 = scmp.lt.s32.totalorder %s16, 2
      // Predicated region
      $region37: #{tpu_custom_call.1} parent=5 // pred_check
        %p298 = pneg %p297
      $region38: #{tpu_custom_call.1} parent=5 // pred_check_branch
        %300 = sbr.rel (%p298) target = $region40
      $region39: #{tpu_custom_call.1} parent=5 // pred_region
        // Predicated region
        $region41: #{tpu_custom_call.1} parent=39 // pred_check
          %p301 = pneg %p76
        $region42: #{tpu_custom_call.1} parent=39 // pred_check_branch
          %303 = sbr.rel (%p301) target = $region44
        $region43: #{tpu_custom_call.1} parent=39 // pred_region
          %s304 = smul.u32 2, %s24
          %p305 = scmp.lt.s32.totalorder %s23, 1
          %s306 = scalar_select %p305, %s23, 1
          %p307 = scmp.lt.s32.totalorder %s304, 1
          %s308 = scalar_select %p307, %s304, 1
          %s309 = smul.addr %s308, 5
          %s310 = smul.addr %s306, 10
          %s311 = sadd.s32 %s309, %s310
          %s312 = smul.addr %s311, 4
          %s313 = scalar_lea.vmem %s1, %s312
          %s314 = smul.u32 2, %s24
        $region44: #{tpu_custom_call.1} parent=39 // pred_fallthru
          _
      $region40: #{tpu_custom_call.1} parent=5 // pred_fallthru
        _
      %p315 = scmp.le.s32.totalorder 1, %s16
      %p316 = scmp.lt.s32.totalorder %s16, 3
      %p317 = pnand %p315, %p316
      %p318 = pneg %p317
      // Predicated region
      $region45: #{tpu_custom_call.1} parent=5 // pred_check
        _
      $region46: #{tpu_custom_call.1} parent=5 // pred_check_branch
        %320 = sbr.rel (%p317) target = $region48
      $region47: #{tpu_custom_call.1} parent=5 // pred_region
        %s321 = ssub.s32 %s16, 1
        %p322 = scmp.lt.s32.totalorder %s25, 1
        %s323 = scalar_select %p322, %s25, 1
        %s324 = smul.addr %s323, 2
        %s325 = smul.addr %s324, 4
        %s326 = scalar_lea.vmem %s0, %s325
        %p327 = pneg %p54
        %p328 = pneg %p51
        %s329 = smul.u32 2, %s26
        %p330 = scmp.lt.s32.totalorder %s25, 1
        %s331 = scalar_select %p330, %s25, 1
        %p332 = scmp.lt.s32.totalorder %s329, 1
        %s333 = scalar_select %p332, %s329, 1
        %s334 = smul.addr %s333, 5
        %s335 = smul.addr %s331, 10
        %s336 = sadd.s32 %s334, %s335
        %s337 = smul.addr %s336, 4
        %s338 = scalar_lea.vmem %s1, %s337
        %p339 = pneg %p82
        %p340 = pneg %p79
        %p341 = scmp.lt.s32.totalorder %s25, 1
        %s342 = scalar_select %p341, %s25, 1
        %s343 = scalar_lea.vmem %s2, %s342
        %p344 = pneg %p108
        %p345 = pneg %p105
        %p346 = scmp.lt.s32.totalorder %s25, 1
        %s347 = scalar_select %p346, %s25, 1
        %s348 = scalar_lea.vmem %s3, %s347
        %p349 = pneg %p134
        %p350 = pneg %p131
        %p351 = scmp.lt.s32.totalorder %s25, 1
        %s352 = scalar_select %p351, %s25, 1
        %s353 = smul.addr %s352, 4
        %s354 = smul.addr %s353, 4
        %s355 = scalar_lea.vmem %s4, %s354
        %p356 = pneg %p160
        %p357 = pneg %p157
        %p358 = scmp.lt.s32.totalorder %s25, 1
        %s359 = scalar_select %p358, %s25, 1
        %s360 = smul.addr %s359, 4
        %s361 = smul.addr %s360, 4
        %s362 = scalar_lea.vmem %s5, %s361
        %p363 = pneg %p186
        %p364 = pneg %p183
        %p365 = scmp.lt.s32.totalorder %s25, 1
        %s366 = scalar_select %p365, %s25, 1
        %s367 = scalar_lea.vmem %s6, %s366
        %p368 = pneg %p212
        %p369 = pneg %p209
        %p370 = pneg %p240
        %p371 = pneg %p237
        %s372 = sand.u32 %s227, 1
        %s373 = scalar_lea.sflag [#allocation4], %s372
        %s374 = sand.u32 %s227, 1
        %s375 = smul.addr %s374, 16
        %s376 = scalar_lea.vmem [#allocation3], %s375
        %p377 = scmp.lt.s32.totalorder %s25, 1
        %s378 = scalar_select %p377, %s25, 1
        %s379 = smul.addr %s378, 2
        %s380 = smul.addr %s379, 4
        %s381 = scalar_lea.vmem %s0, %s380
        %s382 = smul.u32 2, %s26
        %p383 = scmp.lt.s32.totalorder %s25, 1
        %s384 = scalar_select %p383, %s25, 1
        %p385 = scmp.lt.s32.totalorder %s382, 1
        %s386 = scalar_select %p385, %s382, 1
        %s387 = smul.addr %s386, 5
        %s388 = smul.addr %s384, 10
        %s389 = sadd.s32 %s387, %s388
        %s390 = smul.addr %s389, 4
        %s391 = scalar_lea.vmem %s1, %s390
        %s392 = smul.u32 2, %s26
        %p393 = scmp.lt.s32.totalorder %s25, 1
        %s394 = scalar_select %p393, %s25, 1
        %s395 = scalar_lea.vmem %s2, %s394
        %p396 = scmp.lt.s32.totalorder %s25, 1
        %s397 = scalar_select %p396, %s25, 1
        %s398 = scalar_lea.vmem %s3, %s397
        %p399 = scmp.lt.s32.totalorder %s25, 1
        %s400 = scalar_select %p399, %s25, 1
        %s401 = smul.addr %s400, 4
        %s402 = smul.addr %s401, 4
        %s403 = scalar_lea.vmem %s4, %s402
        %p404 = scmp.lt.s32.totalorder %s25, 1
        %s405 = scalar_select %p404, %s25, 1
        %s406 = smul.addr %s405, 4
        %s407 = smul.addr %s406, 4
        %s408 = scalar_lea.vmem %s5, %s407
        %p409 = scmp.lt.s32.totalorder %s25, 1
        %s410 = scalar_select %p409, %s25, 1
        %s411 = scalar_lea.vmem %s6, %s410
        %s412 = smul.u32 2, %s26
        %v414 = vld [vmem:[%s395] sm:$0x1]
        %v415 = vld [vmem:[%s398] sm:$0x1]
        %v416 = vld [vmem:[%s411] sm:$0x1]
        loop: start=0, step=1, limit=2
        $region49: #{tpu_custom_call.1} parent=47 // loop_pre_header
          _
        $region50: #{tpu_custom_call.1} parent=47 // loop_header
          %s418 = sphi 0, %s422
          %p419 = scmp.ge.s32.totalorder %s418, 2
        $region51: #{tpu_custom_call.1} parent=47 // loop_header_branch
          %421 = sbr.rel (%p419) target = $region55
        $region52: #{tpu_custom_call.1} parent=47 // loop_body
          %s423 = smul.u32 %s418, 5
          %s424 = smul.addr %s423, 4
          %s425 = scalar_lea.vmem %s391, %s424
          %v426 = vld [vmem:[%s425] sm:$0xf]
          %v427 = vld [vmem:[%s425 + $0x4] sm:$0xf]
          %v428 = vld [vmem:[%s425 + $0x8] sm:$0xf]
          %v429 = vld [vmem:[%s425 + $0xc] sm:$0xf]
          %v430 = vld [vmem:[%s425 + $0x10] sm:$0x3]
          %v431 = vunpack.c.l.bf16 %v426
          %v432 = vunpack.c.l.bf16 %v427
          %v433 = vunpack.c.l.bf16 %v428
          %v434 = vunpack.c.l.bf16 %v429
          %v435 = vunpack.c.l.bf16 %v430
          %vm436 = vcmask 261120
          %v437 = vsel %vm436, %v431, 0.0
          %438 = vadd.xlane.f32.xlu0 %v437
          %v439 = vpop.xlane.xlu0 %438
          %v440 = vsel %vm436, %v432, 0.0
          %441 = vadd.xlane.f32.xlu0 %v440
          %v442 = vpop.xlane.xlu0 %441
          %v443 = vsel %vm436, %v433, 0.0
          %444 = vadd.xlane.f32.xlu0 %v443
          %v445 = vpop.xlane.xlu0 %444
          %v446 = vsel %vm436, %v434, 0.0
          %447 = vadd.xlane.f32.xlu0 %v446
          %v448 = vpop.xlane.xlu0 %447
          %vm449 = vcmask 257024
          %v450 = vsel %vm449, %v435, 0.0
          %451 = vadd.xlane.f32.xlu0 %v450
          %v452 = vpop.xlane.xlu0 %451
          %v453 = vrcp.pop 32.0
          %v454 = vmul.f32 %v439, %v453
          %v455 = vmul.f32 %v442, %v453
          %v456 = vmul.f32 %v445, %v453
          %v457 = vmul.f32 %v448, %v453
          %v458 = vmul.f32 %v452, %v453
          %v459 = vsub.f32 %v431, %v454
          %v460 = vsub.f32 %v432, %v455
          %v461 = vsub.f32 %v433, %v456
          %v462 = vsub.f32 %v434, %v457
          %v463 = vsub.f32 %v435, %v458
          %v464 = vmul.f32 %v459, %v459
          %v465 = vmul.f32 %v460, %v460
          %v466 = vmul.f32 %v461, %v461
          %v467 = vmul.f32 %v462, %v462
          %v468 = vmul.f32 %v463, %v463
          %v469 = vsel %vm436, %v464, 0.0
          %470 = vadd.xlane.f32.xlu0 %v469
          %v471 = vpop.xlane.xlu0 %470
          %v472 = vsel %vm436, %v465, 0.0
          %473 = vadd.xlane.f32.xlu0 %v472
          %v474 = vpop.xlane.xlu0 %473
          %v475 = vsel %vm436, %v466, 0.0
          %476 = vadd.xlane.f32.xlu0 %v475
          %v477 = vpop.xlane.xlu0 %476
          %v478 = vsel %vm436, %v467, 0.0
          %479 = vadd.xlane.f32.xlu0 %v478
          %v480 = vpop.xlane.xlu0 %479
          %v481 = vsel %vm449, %v468, 0.0
          %482 = vadd.xlane.f32.xlu0 %v481
          %v483 = vpop.xlane.xlu0 %482
          %v484 = vmul.f32 %v471, %v453
          %v485 = vmul.f32 %v474, %v453
          %v486 = vmul.f32 %v477, %v453
          %v487 = vmul.f32 %v480, %v453
          %v488 = vmul.f32 %v483, %v453
          %v489 = vadd.f32 %v484, 1e-06
          %v490 = vadd.f32 %v485, 1e-06
          %v491 = vadd.f32 %v486, 1e-06
          %v492 = vadd.f32 %v487, 1e-06
          %v493 = vadd.f32 %v488, 1e-06
          %v494 = vrsqrt.pop %v489
          %v495 = vrsqrt.pop %v490
          %v496 = vrsqrt.pop %v491
          %v497 = vrsqrt.pop %v492
          %v498 = vrsqrt.pop %v493
          %v499 = vmul.f32 %v459, %v494
          %v500 = vmul.f32 %v460, %v495
          %v501 = vmul.f32 %v461, %v496
          %v502 = vmul.f32 %v462, %v497
          %v503 = vmul.f32 %v463, %v498
          %v505 = vlaneseq
          %v506 = vshrl.u32 %v505, 7
          %v507 = vsub.s32 0, %v506
          %v508 = vrot.slane %v414, %v507
          %v510 = vmul.f32 %v499, %v508
          %v511 = vmul.f32 %v500, %v508
          %v512 = vmul.f32 %v501, %v508
          %v513 = vmul.f32 %v502, %v508
          %v514 = vmul.f32 %v503, %v508
          %v516 = vlaneseq
          %v517 = vshrl.u32 %v516, 7
          %v518 = vsub.s32 0, %v517
          %v519 = vrot.slane %v415, %v518
          %v521 = vadd.f32 %v510, %v519
          %v522 = vadd.f32 %v511, %v519
          %v523 = vadd.f32 %v512, %v519
          %v524 = vadd.f32 %v513, %v519
          %v525 = vadd.f32 %v514, %v519
          %v526 = vpack.c.bf16 %v522, %v521
          %v527 = vpack.c.bf16 %v524, %v523
          %v528 = vpack.c.bf16 %v525, %v525
          %v529 = vld [vmem:[%s403] sm:$0xf]
          %v530 = vld [vmem:[%s403 + $0x4] sm:$0xf]
          %v531 = vld [vmem:[%s403 + $0x8] sm:$0xf]
          %v532 = vld [vmem:[%s403 + $0xc] sm:$0xf]
          %v537 = vunpack.c.l.b16 %v529
          %v538 = vunpack.c.l.b16 %v530
          %v539 = vunpack.c.l.b16 %v531
          %v540 = vunpack.c.l.b16 %v532
          %v541 = vpack.c.b16 %v538, %v537
          %v542 = vpack.c.b16 %v540, %v539
          %v546 = vsel %vm436, %v526, 0
          %v549 = vsel %vm436, %v527, 0
          %v552 = vsel %vm436, %v528, 0
          %554 = vmatprep.subr.bf16.mxu0 0
          %555 = vmatpush1.bf16.msra.mxu0 0
          %556 = vmatprep.subr.bf16.mxu0 0
          %557 = vmatpush1.bf16.msra.mxu0 0
          %558 = vmatprep.subr.bf16.mxu0 0
          %559 = vmatpush1.bf16.msra.mxu0 0
          %560 = vmatprep.subr.bf16.mxu0 0
          %561 = vmatpush1.bf16.msra.mxu0 0
          %562 = vmatprep.subr.bf16.mxu0 0
          %563 = vmatpush1.bf16.msra.mxu0 0
          %564 = vmatprep.subr.bf16.mxu0 0
          %565 = vmatpush1.bf16.msra.mxu0 0
          %566 = vmatprep.subr.bf16.mxu0 0
          %567 = vmatpush1.bf16.msra.mxu0 %v542
          %568 = vmatprep.subr.bf16.mxu0 0
          %569 = vmatpush1.bf16.msra.mxu0 %v541
          %570 = vmatprep.subr.bf16.mxu0 0
          %571 = vmatpush2.bf16.msra.mxu0 0
          %572 = vmatprep.subr.bf16.mxu0 0
          %573 = vmatpush2.bf16.msra.mxu0 0
          %574 = vmatprep.subr.bf16.mxu0 0
          %575 = vmatpush2.bf16.msra.mxu0 0
          %576 = vmatprep.subr.bf16.mxu0 0
          %577 = vmatpush2.bf16.msra.mxu0 0
          %578 = vmatprep.subr.bf16.mxu0 0
          %579 = vmatpush2.bf16.msra.mxu0 0
          %580 = vmatprep.subr.bf16.mxu0 0
          %581 = vmatpush2.bf16.msra.mxu0 0
          %582 = vmatprep.subr.bf16.mxu0 0
          %583 = vmatpush2.bf16.msra.mxu0 0
          %584 = vmatprep.subr.bf16.mxu0 0
          %585 = vmatpush2.bf16.msra.mxu0 0
          %586 = vmatprep.mubr.bf16.mxu0 0
          %587 = vmatmul.mubr.bf16.gmra.mxu0 %v546
          %v588 = vpop.f32.mrf.mxu0
          %v589 = vadd.f32 0.0, %v588
          %v590 = vpop.f32.mrf.mxu0
          %v591 = vpop.f32.mrf.mxu0
          %v592 = vadd.f32 0.0, %v591
          %v593 = vpop.f32.mrf.mxu0
          %594 = vmatprep.mubr.bf16.mxu0 0
          %595 = vmatmul.mubr.bf16.gmra.mxu0 %v549
          %v596 = vpop.f32.mrf.mxu0
          %v597 = vadd.f32 0.0, %v596
          %v598 = vpop.f32.mrf.mxu0
          %v599 = vpop.f32.mrf.mxu0
          %v600 = vadd.f32 0.0, %v599
          %v601 = vpop.f32.mrf.mxu0
          %602 = vmatprep.mubr.bf16.mxu0 0
          %603 = vmatmul.mubr.bf16.gmra.mxu0 %v552
          %v604 = vpop.f32.mrf.mxu0
          %v605 = vadd.f32 0.0, %v604
          %v606 = vpop.f32.mrf.mxu0
          %v607 = vpop.f32.mrf.mxu0
          %v608 = vpop.f32.mrf.mxu0
          %609 = vdwg.mxu0
          %v610 = vpack.c.bf16 %v592, %v589
          %v611 = vpack.c.bf16 %v600, %v597
          %v612 = vpack.c.bf16 %v605, %v605
          %v613 = vld [vmem:[%s381] sm:$0xf]
          %vm614 = vcmask 293888
          %v616 = vsel %vm614, %v613, 0
          %vm618 = vcmask 1041408
          %v620 = vsel %vm618, %v612, 0
          %622 = vmatprep.subr.bf16.mxu0 0
          %623 = vmatpush1.bf16.msra.mxu0 0
          %624 = vmatprep.subr.bf16.mxu0 0
          %625 = vmatpush1.bf16.msra.mxu0 0
          %626 = vmatprep.subr.bf16.mxu0 0
          %627 = vmatpush1.bf16.msra.mxu0 0
          %628 = vmatprep.subr.bf16.mxu0 0
          %629 = vmatpush1.bf16.msra.mxu0 0
          %630 = vmatprep.subr.bf16.mxu0 0
          %631 = vmatpush1.bf16.msra.mxu0 0
          %632 = vmatprep.subr.bf16.mxu0 0
          %633 = vmatpush1.bf16.msra.mxu0 %v620
          %634 = vmatprep.subr.bf16.mxu0 0
          %635 = vmatpush1.bf16.msra.mxu0 %v611
          %636 = vmatprep.subr.bf16.mxu0 0
          %637 = vmatpush1.bf16.msra.mxu0 %v610
          %638 = vmatprep.subr.bf16.mxu0 0
          %639 = vmatpush2.bf16.msra.mxu0 0
          %640 = vmatprep.subr.bf16.mxu0 0
          %641 = vmatpush2.bf16.msra.mxu0 0
          %642 = vmatprep.subr.bf16.mxu0 0
          %643 = vmatpush2.bf16.msra.mxu0 0
          %644 = vmatprep.subr.bf16.mxu0 0
          %645 = vmatpush2.bf16.msra.mxu0 0
          %646 = vmatprep.subr.bf16.mxu0 0
          %647 = vmatpush2.bf16.msra.mxu0 0
          %648 = vmatprep.subr.bf16.mxu0 0
          %649 = vmatpush2.bf16.msra.mxu0 0
          %650 = vmatprep.subr.bf16.mxu0 0
          %651 = vmatpush2.bf16.msra.mxu0 0
          %652 = vmatprep.subr.bf16.mxu0 0
          %653 = vmatpush2.bf16.msra.mxu0 0
          %654 = vmatprep.mubr.bf16.mxu0 0
          %655 = vmatmul.mubr.bf16.gmra.mxu0 %v616
          %v656 = vpop.f32.mrf.mxu0
          %v657 = vadd.f32 0.0, %v656
          %v658 = vpop.f32.mrf.mxu0
          %v659 = vpop.f32.mrf.mxu0
          %v660 = vpop.f32.mrf.mxu0
          %661 = vdwg.mxu0
          %v662 = vpack.c.bf16 %v657, %v657
          %vm663 = vcmask 125952
          %664 = vst.msk [vmem:[#allocation2] sm:$0xf] %vm663, %v662
          %s665 = scalar_lea.vmem %s381, 4
          %v666 = vld [vmem:[%s665] sm:$0xf]
          %670 = vrot.lane.b32.xlu0 %v610, 112
          %v671 = vpop.permute.xlu0 %670
          %672 = vrot.lane.b32.xlu0 %v611, 112
          %v673 = vpop.permute.xlu0 %672
          %674 = vrot.lane.b32.xlu0 %v612, 112
          %v675 = vpop.permute.xlu0 %674
          %v679 = vsel %vm614, %v666, 0
          %v682 = vsel %vm618, %v675, 0
          %684 = vmatprep.subr.bf16.mxu0 0
          %685 = vmatpush1.bf16.msra.mxu0 0
          %686 = vmatprep.subr.bf16.mxu0 0
          %687 = vmatpush1.bf16.msra.mxu0 0
          %688 = vmatprep.subr.bf16.mxu0 0
          %689 = vmatpush1.bf16.msra.mxu0 0
          %690 = vmatprep.subr.bf16.mxu0 0
          %691 = vmatpush1.bf16.msra.mxu0 0
          %692 = vmatprep.subr.bf16.mxu0 0
          %693 = vmatpush1.bf16.msra.mxu0 0
          %694 = vmatprep.subr.bf16.mxu0 0
          %695 = vmatpush1.bf16.msra.mxu0 %v682
          %696 = vmatprep.subr.bf16.mxu0 0
          %697 = vmatpush1.bf16.msra.mxu0 %v673
          %698 = vmatprep.subr.bf16.mxu0 0
          %699 = vmatpush1.bf16.msra.mxu0 %v671
          %700 = vmatprep.subr.bf16.mxu0 0
          %701 = vmatpush2.bf16.msra.mxu0 0
          %702 = vmatprep.subr.bf16.mxu0 0
          %703 = vmatpush2.bf16.msra.mxu0 0
          %704 = vmatprep.subr.bf16.mxu0 0
          %705 = vmatpush2.bf16.msra.mxu0 0
          %706 = vmatprep.subr.bf16.mxu0 0
          %707 = vmatpush2.bf16.msra.mxu0 0
          %708 = vmatprep.subr.bf16.mxu0 0
          %709 = vmatpush2.bf16.msra.mxu0 0
          %710 = vmatprep.subr.bf16.mxu0 0
          %711 = vmatpush2.bf16.msra.mxu0 0
          %712 = vmatprep.subr.bf16.mxu0 0
          %713 = vmatpush2.bf16.msra.mxu0 0
          %714 = vmatprep.subr.bf16.mxu0 0
          %715 = vmatpush2.bf16.msra.mxu0 0
          %716 = vmatprep.mubr.bf16.mxu0 0
          %717 = vmatmul.mubr.bf16.gmra.mxu0 %v679
          %v718 = vpop.f32.mrf.mxu0
          %v719 = vadd.f32 0.0, %v718
          %v720 = vpop.f32.mrf.mxu0
          %v721 = vpop.f32.mrf.mxu0
          %v722 = vpop.f32.mrf.mxu0
          %723 = vdwg.mxu0
          %v724 = vpack.c.bf16 %v719, %v719
          %v726 = vunpack.c.l.b16 %v724
          %v727 = vpack.c.b16 %v726, %v726
          %728 = vrot.lane.b32.xlu0 %v727, 16
          %v729 = vpop.permute.xlu0 %728
          %vm731 = vcmask 257152
          %732 = vst.msk [vmem:[#allocation2] sm:$0xf] %vm731, %v729
          %v733 = vld [vmem:[#allocation2] sm:$0xf]
          %v734 = vld [vmem:[%s408] sm:$0xf]
          %v735 = vld [vmem:[%s408 + $0x4] sm:$0xf]
          %v736 = vld [vmem:[%s408 + $0x8] sm:$0xf]
          %v737 = vld [vmem:[%s408 + $0xc] sm:$0xf]
          %v739 = vlaneseq
          %v740 = vshrl.u32 %v739, 7
          %v741 = vsub.s32 0, %v740
          %v742 = vrot.slane %v416, %v741
          %v748 = vunpack.c.l.b16 %v734
          %v749 = vunpack.c.l.b16 %v735
          %v750 = vunpack.c.l.b16 %v736
          %v751 = vunpack.c.l.b16 %v737
          %v752 = vpack.c.b16 %v749, %v748
          %v753 = vpack.c.b16 %v751, %v750
          %v757 = vsel %vm436, %v733, 0
          %759 = vmatprep.subr.bf16.mxu0 0
          %760 = vmatpush1.bf16.msra.mxu0 0
          %761 = vmatprep.subr.bf16.mxu0 0
          %762 = vmatpush1.bf16.msra.mxu0 0
          %763 = vmatprep.subr.bf16.mxu0 0
          %764 = vmatpush1.bf16.msra.mxu0 0
          %765 = vmatprep.subr.bf16.mxu0 0
          %766 = vmatpush1.bf16.msra.mxu0 0
          %767 = vmatprep.subr.bf16.mxu0 0
          %768 = vmatpush1.bf16.msra.mxu0 0
          %769 = vmatprep.subr.bf16.mxu0 0
          %770 = vmatpush1.bf16.msra.mxu0 0
          %771 = vmatprep.subr.bf16.mxu0 0
          %772 = vmatpush1.bf16.msra.mxu0 %v753
          %773 = vmatprep.subr.bf16.mxu0 0
          %774 = vmatpush1.bf16.msra.mxu0 %v752
          %775 = vmatprep.subr.bf16.mxu0 0
          %776 = vmatpush2.bf16.msra.mxu0 0
          %777 = vmatprep.subr.bf16.mxu0 0
          %778 = vmatpush2.bf16.msra.mxu0 0
          %779 = vmatprep.subr.bf16.mxu0 0
          %780 = vmatpush2.bf16.msra.mxu0 0
          %781 = vmatprep.subr.bf16.mxu0 0
          %782 = vmatpush2.bf16.msra.mxu0 0
          %783 = vmatprep.subr.bf16.mxu0 0
          %784 = vmatpush2.bf16.msra.mxu0 0
          %785 = vmatprep.subr.bf16.mxu0 0
          %786 = vmatpush2.bf16.msra.mxu0 0
          %787 = vmatprep.subr.bf16.mxu0 0
          %788 = vmatpush2.bf16.msra.mxu0 0
          %789 = vmatprep.subr.bf16.mxu0 0
          %790 = vmatpush2.bf16.msra.mxu0 0
          %791 = vmatprep.mubr.bf16.mxu0 0
          %792 = vmatmul.mubr.bf16.gmra.mxu0 %v757
          %v793 = vpop.f32.mrf.mxu0
          %v794 = vadd.f32 %v742, %v793
          %v795 = vpop.f32.mrf.mxu0
          %v796 = vpop.f32.mrf.mxu0
          %v797 = vpop.f32.mrf.mxu0
          %798 = vdwg.mxu0
          %s799 = smul.u32 %s418, 8
          %s800 = scalar_lea.vmem %s376, %s799 [#allocation3]
          %801 = vst [vmem:[%s800] sm:$0xff] %v794
        $region53: #{tpu_custom_call.1} parent=47 // loop_footer
          %s422 = sadd.s32 1, %s418
        $region54: #{tpu_custom_call.1} parent=47 // loop_footer_branch
          %417 = sbr.rel target = $region50
        $region55: #{tpu_custom_call.1} parent=47 // loop_exit
          _
        %s802 = sand.u32 %s227, 1
        %s803 = scalar_lea.sflag [#allocation4], %s802
        %s804 = sand.u32 %s227, 1
        %s805 = smul.addr %s804, 16
        %s806 = scalar_lea.vmem [#allocation3], %s805
        // Predicated region
        $region56: #{tpu_custom_call.1} parent=47 // pred_check
          %p807 = pneg %p237
        $region57: #{tpu_custom_call.1} parent=47 // pred_check_branch
          %809 = sbr.rel (%p807) target = $region59
        $region58: #{tpu_custom_call.1} parent=47 // pred_region
          %s810 = smul.u32 2, %s26
          %s812 = ssub.s32 256, 256
          %813 = vsyncadd %s803, %s812
          %s814 = smul.addr %s810, 2
          %s815 = sadd.s32 %s25, %s814
          %s816 = smul.addr %s815, 128
          %s817 = scalar_lea.hbm %s7, %s816
          %s818 = sshll.u32 %s806, 4
          %s819 = int_to_ptr.vmem [resolvable:$true] %s818
          %824 = dma.vmem_to_hbm [thread:$0]  %s819, 256, %s817, %s803, 128, 256, 8
        $region59: #{tpu_custom_call.1} parent=47 // pred_fallthru
          _
      $region48: #{tpu_custom_call.1} parent=5 // pred_fallthru
        _
      %p825 = scmp.le.s32.totalorder 2, %s16
      // Predicated region
      $region60: #{tpu_custom_call.1} parent=5 // pred_check
        %p826 = pneg %p825
      $region61: #{tpu_custom_call.1} parent=5 // pred_check_branch
        %828 = sbr.rel (%p826) target = $region63
      $region62: #{tpu_custom_call.1} parent=5 // pred_region
        %s829 = ssub.s32 %s16, 2
        // Predicated region
        $region64: #{tpu_custom_call.1} parent=62 // pred_check
          %p830 = pneg %p243
        $region65: #{tpu_custom_call.1} parent=62 // pred_check_branch
          %832 = sbr.rel (%p830) target = $region67
        $region66: #{tpu_custom_call.1} parent=62 // pred_region
          %s833 = sand.u32 %s228, 1
          %s834 = scalar_lea.sflag [#allocation4], %s833
          %s835 = sand.u32 %s228, 1
          %s836 = smul.addr %s835, 16
          %s837 = scalar_lea.vmem [#allocation3], %s836
          %838 = dma.done %s834, 256
        $region67: #{tpu_custom_call.1} parent=62 // pred_fallthru
          _
      $region63: #{tpu_custom_call.1} parent=5 // pred_fallthru
        _
    $region6: #{tpu_custom_call.1} parent=1 // loop_footer
      %s20 = sadd.s32 1, %s16
    $region7: #{tpu_custom_call.1} parent=1 // loop_footer_branch
      %15 = sbr.rel target = $region3
    $region8: #{tpu_custom_call.1} parent=1 // loop_exit
      _
    %839 = vsyncpa [#allocation4], 1
    %s840 = scalar_lea.sflag [#allocation4], 1
    %841 = vsyncpa %s840, 1

// kernel: tpu_custom_call.1
$region0: #{tpu_custom_call.1}
  #allocation0 [shape = 'u32[]', space=smem, size = 0x4, offset = 0x4, fixed_abs, tag = 'smem constant byte address 0x4 - core index']
  #allocation1 [shape = 'u32[144,128]{1,0:T(1,128)}', space=vmem, size = 0x12000, scoped, tag = 'internal scratch']
  #allocation2 [shape = 'bf16[8,32]{1,0:T(8,128)(2,1)}', space=vmem, size = 0x800, scoped, tag = 'scratch operand']
  %s0 = inlined_call_operand.vmem [shape: bf16[2,2,8,36], index: 0, kind: input, shape index: {}]
  %s1 = inlined_call_operand.vmem [shape: bf16[2,2,36,32], index: 1, kind: input, shape index: {}]
  %s2 = inlined_call_operand.vmem [shape: f32[2,1,32], index: 2, kind: input, shape index: {}]
  %s3 = inlined_call_operand.vmem [shape: f32[2,1,32], index: 3, kind: input, shape index: {}]
  %s4 = inlined_call_operand.vmem [shape: bf16[2,32,32], index: 4, kind: input, shape index: {}]
  %s5 = inlined_call_operand.vmem [shape: bf16[2,32,128], index: 5, kind: input, shape index: {}]
  %s6 = inlined_call_operand.vmem [shape: f32[2,1,128], index: 6, kind: input, shape index: {}]
  %s7 = inlined_call_operand.hbm [shape: f32[2,2,8,128], index: 7, kind: output, shape index: {}]
  %s8 = sld [smem:[#allocation0]]
  $region68: #{tpu_custom_call.1} parent=0
    _
  %s10 = ssub.s32 1, %s8
  %s11 = scalar_select 0, %s10, %s8
  $region1: #{tpu_custom_call.1} parent=0
    #allocation3 [shape = 'u8[16384]{0}', space=vmem, size = 0x4000, scoped, tag = 'output window, operand 0']
    #allocation4 [shape = 's32[2]{0}', space=sflag, size = 0x8, scoped, tag = 'scoped memory for tpu_custom_call.1']
    %12 = vsyncpa [#allocation4], 0
    %s13 = scalar_lea.sflag [#allocation4], 1
    %14 = vsyncpa %s13, 0
    loop: start=0, step=1, limit=4
    $region2: #{tpu_custom_call.1} parent=1 // loop_pre_header
      _
    $region3: #{tpu_custom_call.1} parent=1 // loop_header
      %s16 = sphi 0, %s20
      %p17 = scmp.ge.s32.totalorder %s16, 4
      %s23 = sphi 0, %s35
      %s24 = sphi 0, %s31
      %s25 = sphi 0, %s23
      %s26 = sphi 0, %s24
      %s27 = sphi 0, %s25
      %s28 = sphi 0, %s26
      %s38 = sphi 0, %s40
      %s41 = sphi 0, %s38
      %s42 = sphi 0, %s41
      %s58 = sphi 0, %s42
      %s66 = sphi 0, %s68
      %s69 = sphi 0, %s66
      %s70 = sphi 0, %s69
      %s86 = sphi 0, %s70
      %s92 = sphi 0, %s94
      %s95 = sphi 0, %s92
      %s96 = sphi 0, %s95
      %s112 = sphi 0, %s96
      %s118 = sphi 0, %s120
      %s121 = sphi 0, %s118
      %s122 = sphi 0, %s121
      %s138 = sphi 0, %s122
      %s144 = sphi 0, %s146
      %s147 = sphi 0, %s144
      %s148 = sphi 0, %s147
      %s164 = sphi 0, %s148
      %s170 = sphi 0, %s172
      %s173 = sphi 0, %s170
      %s174 = sphi 0, %s173
      %s190 = sphi 0, %s174
      %s196 = sphi 0, %s198
      %s199 = sphi 0, %s196
      %s200 = sphi 0, %s199
      %s216 = sphi 0, %s200
      %s224 = sphi 0, %s226
      %s227 = sphi 0, %s224
      %s228 = sphi 0, %s227
      %s244 = sphi 0, %s228
    $region4: #{tpu_custom_call.1} parent=1 // loop_header_branch
      %19 = sbr.rel (%p17) target = $region8
    $region5: #{tpu_custom_call.1} parent=1 // loop_body
      %s21 = ssub.s32 %s16, 1
      %s22 = ssub.s32 %s16, 2
      %s29 = sadd.s32 1, %s24
      %p30 = scmp.ge.s32.totalorder %s29, 1
      %s31 = scalar_select %p30, 0, %s29
      %s32 = sadd.s32 1, %s23
      %s33 = scalar_select %p30, %s32, %s23
      %p34 = scmp.ge.s32.totalorder %s33, 2
      %s35 = scalar_select %p34, 0, %s33
      %s36 = ssub.s32 %s23, %s35
      %p37 = scmp.eq.s32.totalorder %s36, 0
      %s39 = sadd.s32 %s38, 1
      %s40 = scalar_select %p37, %s38, %s39
      %p43 = pneg %p37
      %p44 = scmp.eq.s32.totalorder %s16, 1
      %p45 = por %p43, %p44
      %p46 = scmp.ne.s32.totalorder %s38, %s41
      %p47 = scmp.eq.s32.totalorder %s16, 0
      %p48 = por %p46, %p47
      %p49 = scmp.ne.s32.totalorder %s38, %s41
      %p50 = scmp.eq.s32.totalorder %s21, 1
      %p51 = por %p49, %p50
      %p52 = scmp.ne.s32.totalorder %s41, %s42
      %p53 = scmp.eq.s32.totalorder %s21, 0
      %p54 = por %p52, %p53
      %p55 = scmp.ne.s32.totalorder %s41, %s42
      %p56 = scmp.eq.s32.totalorder %s22, 1
      %p57 = por %p55, %p56
      %p59 = scmp.ne.s32.totalorder %s42, %s58
      %p60 = scmp.eq.s32.totalorder %s22, 0
      %p61 = por %p59, %p60
      %s62 = ssub.s32 %s23, %s35
      %s63 = ssub.s32 %s24, %s31
      %s64 = sor.u32 %s62, %s63
      %p65 = scmp.eq.s32.totalorder %s64, 0
      %s67 = sadd.s32 %s66, 1
      %s68 = scalar_select %p65, %s66, %s67
      %p71 = pneg %p65
      %p72 = scmp.eq.s32.totalorder %s16, 1
      %p73 = por %p71, %p72
      %p74 = scmp.ne.s32.totalorder %s66, %s69
      %p75 = scmp.eq.s32.totalorder %s16, 0
      %p76 = por %p74, %p75
      %p77 = scmp.ne.s32.totalorder %s66, %s69
      %p78 = scmp.eq.s32.totalorder %s21, 1
      %p79 = por %p77, %p78
      %p80 = scmp.ne.s32.totalorder %s69, %s70
      %p81 = scmp.eq.s32.totalorder %s21, 0
      %p82 = por %p80, %p81
      %p83 = scmp.ne.s32.totalorder %s69, %s70
      %p84 = scmp.eq.s32.totalorder %s22, 1
      %p85 = por %p83, %p84
      %p87 = scmp.ne.s32.totalorder %s70, %s86
      %p88 = scmp.eq.s32.totalorder %s22, 0
      %p89 = por %p87, %p88
      %s90 = ssub.s32 %s23, %s35
      %p91 = scmp.eq.s32.totalorder %s90, 0
      %s93 = sadd.s32 %s92, 1
      %s94 = scalar_select %p91, %s92, %s93
      %p97 = pneg %p91
      %p98 = scmp.eq.s32.totalorder %s16, 1
      %p99 = por %p97, %p98
      %p100 = scmp.ne.s32.totalorder %s92, %s95
      %p101 = scmp.eq.s32.totalorder %s16, 0
      %p102 = por %p100, %p101
      %p103 = scmp.ne.s32.totalorder %s92, %s95
      %p104 = scmp.eq.s32.totalorder %s21, 1
      %p105 = por %p103, %p104
      %p106 = scmp.ne.s32.totalorder %s95, %s96
      %p107 = scmp.eq.s32.totalorder %s21, 0
      %p108 = por %p106, %p107
      %p109 = scmp.ne.s32.totalorder %s95, %s96
      %p110 = scmp.eq.s32.totalorder %s22, 1
      %p111 = por %p109, %p110
      %p113 = scmp.ne.s32.totalorder %s96, %s112
      %p114 = scmp.eq.s32.totalorder %s22, 0
      %p115 = por %p113, %p114
      %s116 = ssub.s32 %s23, %s35
      %p117 = scmp.eq.s32.totalorder %s116, 0
      %s119 = sadd.s32 %s118, 1
      %s120 = scalar_select %p117, %s118, %s119
      %p123 = pneg %p117
      %p124 = scmp.eq.s32.totalorder %s16, 1
      %p125 = por %p123, %p124
      %p126 = scmp.ne.s32.totalorder %s118, %s121
      %p127 = scmp.eq.s32.totalorder %s16, 0
      %p128 = por %p126, %p127
      %p129 = scmp.ne.s32.totalorder %s118, %s121
      %p130 = scmp.eq.s32.totalorder %s21, 1
      %p131 = por %p129, %p130
      %p132 = scmp.ne.s32.totalorder %s121, %s122
      %p133 = scmp.eq.s32.totalorder %s21, 0
      %p134 = por %p132, %p133
      %p135 = scmp.ne.s32.totalorder %s121, %s122
      %p136 = scmp.eq.s32.totalorder %s22, 1
      %p137 = por %p135, %p136
      %p139 = scmp.ne.s32.totalorder %s122, %s138
      %p140 = scmp.eq.s32.totalorder %s22, 0
      %p141 = por %p139, %p140
      %s142 = ssub.s32 %s23, %s35
      %p143 = scmp.eq.s32.totalorder %s142, 0
      %s145 = sadd.s32 %s144, 1
      %s146 = scalar_select %p143, %s144, %s145
      %p149 = pneg %p143
      %p150 = scmp.eq.s32.totalorder %s16, 1
      %p151 = por %p149, %p150
      %p152 = scmp.ne.s32.totalorder %s144, %s147
      %p153 = scmp.eq.s32.totalorder %s16, 0
      %p154 = por %p152, %p153
      %p155 = scmp.ne.s32.totalorder %s144, %s147
      %p156 = scmp.eq.s32.totalorder %s21, 1
      %p157 = por %p155, %p156
      %p158 = scmp.ne.s32.totalorder %s147, %s148
      %p159 = scmp.eq.s32.totalorder %s21, 0
      %p160 = por %p158, %p159
      %p161 = scmp.ne.s32.totalorder %s147, %s148
      %p162 = scmp.eq.s32.totalorder %s22, 1
      %p163 = por %p161, %p162
      %p165 = scmp.ne.s32.totalorder %s148, %s164
      %p166 = scmp.eq.s32.totalorder %s22, 0
      %p167 = por %p165, %p166
      %s168 = ssub.s32 %s23, %s35
      %p169 = scmp.eq.s32.totalorder %s168, 0
      %s171 = sadd.s32 %s170, 1
      %s172 = scalar_select %p169, %s170, %s171
      %p175 = pneg %p169
      %p176 = scmp.eq.s32.totalorder %s16, 1
      %p177 = por %p175, %p176
      %p178 = scmp.ne.s32.totalorder %s170, %s173
      %p179 = scmp.eq.s32.totalorder %s16, 0
      %p180 = por %p178, %p179
      %p181 = scmp.ne.s32.totalorder %s170, %s173
      %p182 = scmp.eq.s32.totalorder %s21, 1
      %p183 = por %p181, %p182
      %p184 = scmp.ne.s32.totalorder %s173, %s174
      %p185 = scmp.eq.s32.totalorder %s21, 0
      %p186 = por %p184, %p185
      %p187 = scmp.ne.s32.totalorder %s173, %s174
      %p188 = scmp.eq.s32.totalorder %s22, 1
      %p189 = por %p187, %p188
      %p191 = scmp.ne.s32.totalorder %s174, %s190
      %p192 = scmp.eq.s32.totalorder %s22, 0
      %p193 = por %p191, %p192
      %s194 = ssub.s32 %s23, %s35
      %p195 = scmp.eq.s32.totalorder %s194, 0
      %s197 = sadd.s32 %s196, 1
      %s198 = scalar_select %p195, %s196, %s197
      %p201 = pneg %p195
      %p202 = scmp.eq.s32.totalorder %s16, 1
      %p203 = por %p201, %p202
      %p204 = scmp.ne.s32.totalorder %s196, %s199
      %p205 = scmp.eq.s32.totalorder %s16, 0
      %p206 = por %p204, %p205
      %p207 = scmp.ne.s32.totalorder %s196, %s199
      %p208 = scmp.eq.s32.totalorder %s21, 1
      %p209 = por %p207, %p208
      %p210 = scmp.ne.s32.totalorder %s199, %s200
      %p211 = scmp.eq.s32.totalorder %s21, 0
      %p212 = por %p210, %p211
      %p213 = scmp.ne.s32.totalorder %s199, %s200
      %p214 = scmp.eq.s32.totalorder %s22, 1
      %p215 = por %p213, %p214
      %p217 = scmp.ne.s32.totalorder %s200, %s216
      %p218 = scmp.eq.s32.totalorder %s22, 0
      %p219 = por %p217, %p218
      %s220 = ssub.s32 %s24, %s31
      %s221 = ssub.s32 %s23, %s35
      %s222 = sor.u32 %s220, %s221
      %p223 = scmp.eq.s32.totalorder %s222, 0
      %s225 = sadd.s32 %s224, 1
      %s226 = scalar_select %p223, %s224, %s225
      %p229 = pneg %p223
      %p230 = scmp.eq.s32.totalorder %s16, 1
      %p231 = por %p229, %p230
      %p232 = scmp.ne.s32.totalorder %s224, %s227
      %p233 = scmp.eq.s32.totalorder %s16, 0
      %p234 = por %p232, %p233
      %p235 = scmp.ne.s32.totalorder %s224, %s227
      %p236 = scmp.eq.s32.totalorder %s21, 1
      %p237 = por %p235, %p236
      %p238 = scmp.ne.s32.totalorder %s227, %s228
      %p239 = scmp.eq.s32.totalorder %s21, 0
      %p240 = por %p238, %p239
      %p241 = scmp.ne.s32.totalorder %s227, %s228
      %p242 = scmp.eq.s32.totalorder %s22, 1
      %p243 = por %p241, %p242
      %p245 = scmp.ne.s32.totalorder %s228, %s244
      %p246 = scmp.eq.s32.totalorder %s22, 0
      %p247 = por %p245, %p246
      %p248 = scmp.le.s32.totalorder 1, %s16
      %p249 = scmp.lt.s32.totalorder %s16, 3
      %p250 = pnand %p248, %p249
      %p251 = pneg %p250
      // Predicated region
      $region9: #{tpu_custom_call.1} parent=5 // pred_check
        _
      $region10: #{tpu_custom_call.1} parent=5 // pred_check_branch
        %253 = sbr.rel (%p250) target = $region12
      $region11: #{tpu_custom_call.1} parent=5 // pred_region
        %s254 = ssub.s32 %s16, 1
      $region12: #{tpu_custom_call.1} parent=5 // pred_fallthru
        _
      %p255 = scmp.lt.s32.totalorder %s16, 2
      // Predicated region
      $region13: #{tpu_custom_call.1} parent=5 // pred_check
        %p256 = pneg %p255
      $region14: #{tpu_custom_call.1} parent=5 // pred_check_branch
        %258 = sbr.rel (%p256) target = $region16
      $region15: #{tpu_custom_call.1} parent=5 // pred_region
        // Predicated region
        $region17: #{tpu_custom_call.1} parent=15 // pred_check
          %p259 = pneg %p48
        $region18: #{tpu_custom_call.1} parent=15 // pred_check_branch
          %261 = sbr.rel (%p259) target = $region20
        $region19: #{tpu_custom_call.1} parent=15 // pred_region
          %p262 = scmp.lt.s32.totalorder %s23, 1
          %s263 = scalar_select %p262, %s23, 1
          %s264 = smul.addr %s263, 2
          %s265 = smul.addr %s264, 4
          %s266 = scalar_lea.vmem %s0, %s265
        $region20: #{tpu_custom_call.1} parent=15 // pred_fallthru
          _
        // Predicated region
        $region21: #{tpu_custom_call.1} parent=15 // pred_check
          %p267 = pneg %p76
        $region22: #{tpu_custom_call.1} parent=15 // pred_check_branch
          %269 = sbr.rel (%p267) target = $region24
        $region23: #{tpu_custom_call.1} parent=15 // pred_region
          %s270 = smul.u32 2, %s24
          %p271 = scmp.lt.s32.totalorder %s23, 1
          %s272 = scalar_select %p271, %s23, 1
          %p273 = scmp.lt.s32.totalorder %s270, 1
          %s274 = scalar_select %p273, %s270, 1
          %s275 = smul.addr %s274, 5
          %s276 = smul.addr %s272, 10
          %s277 = sadd.s32 %s275, %s276
          %s278 = smul.addr %s277, 4
          %s279 = scalar_lea.vmem %s1, %s278
          %s280 = smul.u32 2, %s24
        $region24: #{tpu_custom_call.1} parent=15 // pred_fallthru
          _
        // Predicated region
        $region25: #{tpu_custom_call.1} parent=15 // pred_check
          %p281 = pneg %p102
        $region26: #{tpu_custom_call.1} parent=15 // pred_check_branch
          %283 = sbr.rel (%p281) target = $region28
        $region27: #{tpu_custom_call.1} parent=15 // pred_region
          %p284 = scmp.lt.s32.totalorder %s23, 1
          %s285 = scalar_select %p284, %s23, 1
          %s286 = scalar_lea.vmem %s2, %s285
        $region28: #{tpu_custom_call.1} parent=15 // pred_fallthru
          _
        // Predicated region
        $region29: #{tpu_custom_call.1} parent=15 // pred_check
          %p287 = pneg %p128
        $region30: #{tpu_custom_call.1} parent=15 // pred_check_branch
          %289 = sbr.rel (%p287) target = $region32
        $region31: #{tpu_custom_call.1} parent=15 // pred_region
          %p290 = scmp.lt.s32.totalorder %s23, 1
          %s291 = scalar_select %p290, %s23, 1
          %s292 = scalar_lea.vmem %s3, %s291
        $region32: #{tpu_custom_call.1} parent=15 // pred_fallthru
          _
        // Predicated region
        $region33: #{tpu_custom_call.1} parent=15 // pred_check
          %p293 = pneg %p154
        $region34: #{tpu_custom_call.1} parent=15 // pred_check_branch
          %295 = sbr.rel (%p293) target = $region36
        $region35: #{tpu_custom_call.1} parent=15 // pred_region
          %p296 = scmp.lt.s32.totalorder %s23, 1
          %s297 = scalar_select %p296, %s23, 1
          %s298 = smul.addr %s297, 4
          %s299 = smul.addr %s298, 4
          %s300 = scalar_lea.vmem %s4, %s299
        $region36: #{tpu_custom_call.1} parent=15 // pred_fallthru
          _
        // Predicated region
        $region37: #{tpu_custom_call.1} parent=15 // pred_check
          %p301 = pneg %p180
        $region38: #{tpu_custom_call.1} parent=15 // pred_check_branch
          %303 = sbr.rel (%p301) target = $region40
        $region39: #{tpu_custom_call.1} parent=15 // pred_region
          %p304 = scmp.lt.s32.totalorder %s23, 1
          %s305 = scalar_select %p304, %s23, 1
          %s306 = smul.addr %s305, 4
          %s307 = smul.addr %s306, 4
          %s308 = scalar_lea.vmem %s5, %s307
        $region40: #{tpu_custom_call.1} parent=15 // pred_fallthru
          _
        // Predicated region
        $region41: #{tpu_custom_call.1} parent=15 // pred_check
          %p309 = pneg %p206
        $region42: #{tpu_custom_call.1} parent=15 // pred_check_branch
          %311 = sbr.rel (%p309) target = $region44
        $region43: #{tpu_custom_call.1} parent=15 // pred_region
          %p312 = scmp.lt.s32.totalorder %s23, 1
          %s313 = scalar_select %p312, %s23, 1
          %s314 = scalar_lea.vmem %s6, %s313
        $region44: #{tpu_custom_call.1} parent=15 // pred_fallthru
          _
      $region16: #{tpu_custom_call.1} parent=5 // pred_fallthru
        _
      %p315 = scmp.le.s32.totalorder 1, %s16
      %p316 = scmp.lt.s32.totalorder %s16, 3
      %p317 = pnand %p315, %p316
      %p318 = pneg %p317
      // Predicated region
      $region45: #{tpu_custom_call.1} parent=5 // pred_check
        _
      $region46: #{tpu_custom_call.1} parent=5 // pred_check_branch
        %320 = sbr.rel (%p317) target = $region48
      $region47: #{tpu_custom_call.1} parent=5 // pred_region
        %s321 = ssub.s32 %s16, 1
        %p322 = scmp.lt.s32.totalorder %s25, 1
        %s323 = scalar_select %p322, %s25, 1
        %s324 = smul.addr %s323, 2
        %s325 = smul.addr %s324, 4
        %s326 = scalar_lea.vmem %s0, %s325
        %p327 = pneg %p54
        %p328 = pneg %p51
        %s329 = smul.u32 2, %s26
        %p330 = scmp.lt.s32.totalorder %s25, 1
        %s331 = scalar_select %p330, %s25, 1
        %p332 = scmp.lt.s32.totalorder %s329, 1
        %s333 = scalar_select %p332, %s329, 1
        %s334 = smul.addr %s333, 5
        %s335 = smul.addr %s331, 10
        %s336 = sadd.s32 %s334, %s335
        %s337 = smul.addr %s336, 4
        %s338 = scalar_lea.vmem %s1, %s337
        %p339 = pneg %p82
        %p340 = pneg %p79
        %p341 = scmp.lt.s32.totalorder %s25, 1
        %s342 = scalar_select %p341, %s25, 1
        %s343 = scalar_lea.vmem %s2, %s342
        %p344 = pneg %p108
        %p345 = pneg %p105
        %p346 = scmp.lt.s32.totalorder %s25, 1
        %s347 = scalar_select %p346, %s25, 1
        %s348 = scalar_lea.vmem %s3, %s347
        %p349 = pneg %p134
        %p350 = pneg %p131
        %p351 = scmp.lt.s32.totalorder %s25, 1
        %s352 = scalar_select %p351, %s25, 1
        %s353 = smul.addr %s352, 4
        %s354 = smul.addr %s353, 4
        %s355 = scalar_lea.vmem %s4, %s354
        %p356 = pneg %p160
        %p357 = pneg %p157
        %p358 = scmp.lt.s32.totalorder %s25, 1
        %s359 = scalar_select %p358, %s25, 1
        %s360 = smul.addr %s359, 4
        %s361 = smul.addr %s360, 4
        %s362 = scalar_lea.vmem %s5, %s361
        %p363 = pneg %p186
        %p364 = pneg %p183
        %p365 = scmp.lt.s32.totalorder %s25, 1
        %s366 = scalar_select %p365, %s25, 1
        %s367 = scalar_lea.vmem %s6, %s366
        %p368 = pneg %p212
        %p369 = pneg %p209
        %p370 = pneg %p240
        %p371 = pneg %p237
        %s372 = sand.u32 %s227, 1
        %s373 = scalar_lea.sflag [#allocation4], %s372
        %s374 = sand.u32 %s227, 1
        %s375 = smul.addr %s374, 16
        %s376 = scalar_lea.vmem [#allocation3], %s375
        %p377 = scmp.lt.s32.totalorder %s25, 1
        %s378 = scalar_select %p377, %s25, 1
        %s379 = smul.addr %s378, 2
        %s380 = smul.addr %s379, 4
        %s381 = scalar_lea.vmem %s0, %s380
        %s382 = smul.u32 2, %s26
        %p383 = scmp.lt.s32.totalorder %s25, 1
        %s384 = scalar_select %p383, %s25, 1
        %p385 = scmp.lt.s32.totalorder %s382, 1
        %s386 = scalar_select %p385, %s382, 1
        %s387 = smul.addr %s386, 5
        %s388 = smul.addr %s384, 10
        %s389 = sadd.s32 %s387, %s388
        %s390 = smul.addr %s389, 4
        %s391 = scalar_lea.vmem %s1, %s390
        %s392 = smul.u32 2, %s26
        %p393 = scmp.lt.s32.totalorder %s25, 1
        %s394 = scalar_select %p393, %s25, 1
        %s395 = scalar_lea.vmem %s2, %s394
        %p396 = scmp.lt.s32.totalorder %s25, 1
        %s397 = scalar_select %p396, %s25, 1
        %s398 = scalar_lea.vmem %s3, %s397
        %p399 = scmp.lt.s32.totalorder %s25, 1
        %s400 = scalar_select %p399, %s25, 1
        %s401 = smul.addr %s400, 4
        %s402 = smul.addr %s401, 4
        %s403 = scalar_lea.vmem %s4, %s402
        %p404 = scmp.lt.s32.totalorder %s25, 1
        %s405 = scalar_select %p404, %s25, 1
        %s406 = smul.addr %s405, 4
        %s407 = smul.addr %s406, 4
        %s408 = scalar_lea.vmem %s5, %s407
        %p409 = scmp.lt.s32.totalorder %s25, 1
        %s410 = scalar_select %p409, %s25, 1
        %s411 = scalar_lea.vmem %s6, %s410
        %s412 = smul.u32 2, %s26
        %v414 = vld [vmem:[%s395] sm:$0x1]
        %v415 = vld [vmem:[%s398] sm:$0x1]
        %v416 = vld [vmem:[%s411] sm:$0x1]
        loop: start=0, step=1, limit=2
        $region49: #{tpu_custom_call.1} parent=47 // loop_pre_header
          _
        $region50: #{tpu_custom_call.1} parent=47 // loop_header
          %s418 = sphi 0, %s422
          %p419 = scmp.ge.s32.totalorder %s418, 2
        $region51: #{tpu_custom_call.1} parent=47 // loop_header_branch
          %421 = sbr.rel (%p419) target = $region55
        $region52: #{tpu_custom_call.1} parent=47 // loop_body
          %s423 = smul.u32 %s418, 5
          %s424 = smul.addr %s423, 4
          %s425 = scalar_lea.vmem %s391, %s424
          %v426 = vld [vmem:[%s425] sm:$0xf]
          %v427 = vld [vmem:[%s425 + $0x4] sm:$0xf]
          %v428 = vld [vmem:[%s425 + $0x8] sm:$0xf]
          %v429 = vld [vmem:[%s425 + $0xc] sm:$0xf]
          %v430 = vld [vmem:[%s425 + $0x10] sm:$0x3]
          %v431 = vunpack.c.l.bf16 %v426
          %v432 = vunpack.c.l.bf16 %v427
          %v433 = vunpack.c.l.bf16 %v428
          %v434 = vunpack.c.l.bf16 %v429
          %v435 = vunpack.c.l.bf16 %v430
          %vm436 = vcmask 261120
          %v437 = vsel %vm436, %v431, 0.0
          %438 = vadd.xlane.f32.xlu0 %v437
          %v439 = vpop.xlane.xlu0 %438
          %v440 = vsel %vm436, %v432, 0.0
          %441 = vadd.xlane.f32.xlu0 %v440
          %v442 = vpop.xlane.xlu0 %441
          %v443 = vsel %vm436, %v433, 0.0
          %444 = vadd.xlane.f32.xlu0 %v443
          %v445 = vpop.xlane.xlu0 %444
          %v446 = vsel %vm436, %v434, 0.0
          %447 = vadd.xlane.f32.xlu0 %v446
          %v448 = vpop.xlane.xlu0 %447
          %vm449 = vcmask 257024
          %v450 = vsel %vm449, %v435, 0.0
          %451 = vadd.xlane.f32.xlu0 %v450
          %v452 = vpop.xlane.xlu0 %451
          %v453 = vrcp.pop 32.0
          %v454 = vmul.f32 %v439, %v453
          %v455 = vmul.f32 %v442, %v453
          %v456 = vmul.f32 %v445, %v453
          %v457 = vmul.f32 %v448, %v453
          %v458 = vmul.f32 %v452, %v453
          %v459 = vsub.f32 %v431, %v454
          %v460 = vsub.f32 %v432, %v455
          %v461 = vsub.f32 %v433, %v456
          %v462 = vsub.f32 %v434, %v457
          %v463 = vsub.f32 %v435, %v458
          %v464 = vmul.f32 %v459, %v459
          %v465 = vmul.f32 %v460, %v460
          %v466 = vmul.f32 %v461, %v461
          %v467 = vmul.f32 %v462, %v462
          %v468 = vmul.f32 %v463, %v463
          %v469 = vsel %vm436, %v464, 0.0
          %470 = vadd.xlane.f32.xlu0 %v469
          %v471 = vpop.xlane.xlu0 %470
          %v472 = vsel %vm436, %v465, 0.0
          %473 = vadd.xlane.f32.xlu0 %v472
          %v474 = vpop.xlane.xlu0 %473
          %v475 = vsel %vm436, %v466, 0.0
          %476 = vadd.xlane.f32.xlu0 %v475
          %v477 = vpop.xlane.xlu0 %476
          %v478 = vsel %vm436, %v467, 0.0
          %479 = vadd.xlane.f32.xlu0 %v478
          %v480 = vpop.xlane.xlu0 %479
          %v481 = vsel %vm449, %v468, 0.0
          %482 = vadd.xlane.f32.xlu0 %v481
          %v483 = vpop.xlane.xlu0 %482
          %v484 = vmul.f32 %v471, %v453
          %v485 = vmul.f32 %v474, %v453
          %v486 = vmul.f32 %v477, %v453
          %v487 = vmul.f32 %v480, %v453
          %v488 = vmul.f32 %v483, %v453
          %v489 = vadd.f32 %v484, 1e-06
          %v490 = vadd.f32 %v485, 1e-06
          %v491 = vadd.f32 %v486, 1e-06
          %v492 = vadd.f32 %v487, 1e-06
          %v493 = vadd.f32 %v488, 1e-06
          %v494 = vrsqrt.pop %v489
          %v495 = vrsqrt.pop %v490
          %v496 = vrsqrt.pop %v491
          %v497 = vrsqrt.pop %v492
          %v498 = vrsqrt.pop %v493
          %v499 = vmul.f32 %v459, %v494
          %v500 = vmul.f32 %v460, %v495
          %v501 = vmul.f32 %v461, %v496
          %v502 = vmul.f32 %v462, %v497
          %v503 = vmul.f32 %v463, %v498
          %v505 = vlaneseq
          %v506 = vshrl.u32 %v505, 7
          %v507 = vsub.s32 0, %v506
          %v508 = vrot.slane %v414, %v507
          %v510 = vmul.f32 %v499, %v508
          %v511 = vmul.f32 %v500, %v508
          %v512 = vmul.f32 %v501, %v508
          %v513 = vmul.f32 %v502, %v508
          %v514 = vmul.f32 %v503, %v508
          %v516 = vlaneseq
          %v517 = vshrl.u32 %v516, 7
          %v518 = vsub.s32 0, %v517
          %v519 = vrot.slane %v415, %v518
          %v521 = vadd.f32 %v510, %v519
          %v522 = vadd.f32 %v511, %v519
          %v523 = vadd.f32 %v512, %v519
          %v524 = vadd.f32 %v513, %v519
          %v525 = vadd.f32 %v514, %v519
          %v526 = vpack.c.bf16 %v522, %v521
          %v527 = vpack.c.bf16 %v524, %v523
          %v528 = vpack.c.bf16 %v525, %v525
          %v529 = vld [vmem:[%s403] sm:$0xf]
          %v530 = vld [vmem:[%s403 + $0x4] sm:$0xf]
          %v531 = vld [vmem:[%s403 + $0x8] sm:$0xf]
          %v532 = vld [vmem:[%s403 + $0xc] sm:$0xf]
          %v537 = vunpack.c.l.b16 %v529
          %v538 = vunpack.c.l.b16 %v530
          %v539 = vunpack.c.l.b16 %v531
          %v540 = vunpack.c.l.b16 %v532
          %v541 = vpack.c.b16 %v538, %v537
          %v542 = vpack.c.b16 %v540, %v539
          %v546 = vsel %vm436, %v526, 0
          %v549 = vsel %vm436, %v527, 0
          %v552 = vsel %vm436, %v528, 0
          %554 = vmatprep.subr.bf16.mxu0 0
          %555 = vmatpush1.bf16.msra.mxu0 0
          %556 = vmatprep.subr.bf16.mxu0 0
          %557 = vmatpush1.bf16.msra.mxu0 0
          %558 = vmatprep.subr.bf16.mxu0 0
          %559 = vmatpush1.bf16.msra.mxu0 0
          %560 = vmatprep.subr.bf16.mxu0 0
          %561 = vmatpush1.bf16.msra.mxu0 0
          %562 = vmatprep.subr.bf16.mxu0 0
          %563 = vmatpush1.bf16.msra.mxu0 0
          %564 = vmatprep.subr.bf16.mxu0 0
          %565 = vmatpush1.bf16.msra.mxu0 0
          %566 = vmatprep.subr.bf16.mxu0 0
          %567 = vmatpush1.bf16.msra.mxu0 %v542
          %568 = vmatprep.subr.bf16.mxu0 0
          %569 = vmatpush1.bf16.msra.mxu0 %v541
          %570 = vmatprep.subr.bf16.mxu0 0
          %571 = vmatpush2.bf16.msra.mxu0 0
          %572 = vmatprep.subr.bf16.mxu0 0
          %573 = vmatpush2.bf16.msra.mxu0 0
          %574 = vmatprep.subr.bf16.mxu0 0
          %575 = vmatpush2.bf16.msra.mxu0 0
          %576 = vmatprep.subr.bf16.mxu0 0
          %577 = vmatpush2.bf16.msra.mxu0 0
          %578 = vmatprep.subr.bf16.mxu0 0
          %579 = vmatpush2.bf16.msra.mxu0 0
          %580 = vmatprep.subr.bf16.mxu0 0
          %581 = vmatpush2.bf16.msra.mxu0 0
          %582 = vmatprep.subr.bf16.mxu0 0
          %583 = vmatpush2.bf16.msra.mxu0 0
          %584 = vmatprep.subr.bf16.mxu0 0
          %585 = vmatpush2.bf16.msra.mxu0 0
          %586 = vmatprep.mubr.bf16.mxu0 0
          %587 = vmatmul.mubr.bf16.gmra.mxu0 %v546
          %v588 = vpop.f32.mrf.mxu0
          %v589 = vadd.f32 0.0, %v588
          %v590 = vpop.f32.mrf.mxu0
          %v591 = vpop.f32.mrf.mxu0
          %v592 = vadd.f32 0.0, %v591
          %v593 = vpop.f32.mrf.mxu0
          %594 = vmatprep.mubr.bf16.mxu0 0
          %595 = vmatmul.mubr.bf16.gmra.mxu0 %v549
          %v596 = vpop.f32.mrf.mxu0
          %v597 = vadd.f32 0.0, %v596
          %v598 = vpop.f32.mrf.mxu0
          %v599 = vpop.f32.mrf.mxu0
          %v600 = vadd.f32 0.0, %v599
          %v601 = vpop.f32.mrf.mxu0
          %602 = vmatprep.mubr.bf16.mxu0 0
          %603 = vmatmul.mubr.bf16.gmra.mxu0 %v552
          %v604 = vpop.f32.mrf.mxu0
          %v605 = vadd.f32 0.0, %v604
          %v606 = vpop.f32.mrf.mxu0
          %v607 = vpop.f32.mrf.mxu0
          %v608 = vpop.f32.mrf.mxu0
          %609 = vdwg.mxu0
          %v610 = vpack.c.bf16 %v592, %v589
          %v611 = vpack.c.bf16 %v600, %v597
          %v612 = vpack.c.bf16 %v605, %v605
          %v613 = vld [vmem:[%s381] sm:$0xf]
          %vm614 = vcmask 293888
          %v616 = vsel %vm614, %v613, 0
          %vm618 = vcmask 1041408
          %v620 = vsel %vm618, %v612, 0
          %622 = vmatprep.subr.bf16.mxu0 0
          %623 = vmatpush1.bf16.msra.mxu0 0
          %624 = vmatprep.subr.bf16.mxu0 0
          %625 = vmatpush1.bf16.msra.mxu0 0
          %626 = vmatprep.subr.bf16.mxu0 0
          %627 = vmatpush1.bf16.msra.mxu0 0
          %628 = vmatprep.subr.bf16.mxu0 0
          %629 = vmatpush1.bf16.msra.mxu0 0
          %630 = vmatprep.subr.bf16.mxu0 0
          %631 = vmatpush1.bf16.msra.mxu0 0
          %632 = vmatprep.subr.bf16.mxu0 0
          %633 = vmatpush1.bf16.msra.mxu0 %v620
          %634 = vmatprep.subr.bf16.mxu0 0
          %635 = vmatpush1.bf16.msra.mxu0 %v611
          %636 = vmatprep.subr.bf16.mxu0 0
          %637 = vmatpush1.bf16.msra.mxu0 %v610
          %638 = vmatprep.subr.bf16.mxu0 0
          %639 = vmatpush2.bf16.msra.mxu0 0
          %640 = vmatprep.subr.bf16.mxu0 0
          %641 = vmatpush2.bf16.msra.mxu0 0
          %642 = vmatprep.subr.bf16.mxu0 0
          %643 = vmatpush2.bf16.msra.mxu0 0
          %644 = vmatprep.subr.bf16.mxu0 0
          %645 = vmatpush2.bf16.msra.mxu0 0
          %646 = vmatprep.subr.bf16.mxu0 0
          %647 = vmatpush2.bf16.msra.mxu0 0
          %648 = vmatprep.subr.bf16.mxu0 0
          %649 = vmatpush2.bf16.msra.mxu0 0
          %650 = vmatprep.subr.bf16.mxu0 0
          %651 = vmatpush2.bf16.msra.mxu0 0
          %652 = vmatprep.subr.bf16.mxu0 0
          %653 = vmatpush2.bf16.msra.mxu0 0
          %654 = vmatprep.mubr.bf16.mxu0 0
          %655 = vmatmul.mubr.bf16.gmra.mxu0 %v616
          %v656 = vpop.f32.mrf.mxu0
          %v657 = vadd.f32 0.0, %v656
          %v658 = vpop.f32.mrf.mxu0
          %v659 = vpop.f32.mrf.mxu0
          %v660 = vpop.f32.mrf.mxu0
          %661 = vdwg.mxu0
          %v662 = vpack.c.bf16 %v657, %v657
          %vm663 = vcmask 125952
          %664 = vst.msk [vmem:[#allocation2] sm:$0xf] %vm663, %v662
          %s665 = scalar_lea.vmem %s381, 4
          %v666 = vld [vmem:[%s665] sm:$0xf]
          %670 = vrot.lane.b32.xlu0 %v610, 112
          %v671 = vpop.permute.xlu0 %670
          %672 = vrot.lane.b32.xlu0 %v611, 112
          %v673 = vpop.permute.xlu0 %672
          %674 = vrot.lane.b32.xlu0 %v612, 112
          %v675 = vpop.permute.xlu0 %674
          %v679 = vsel %vm614, %v666, 0
          %v682 = vsel %vm618, %v675, 0
          %684 = vmatprep.subr.bf16.mxu0 0
          %685 = vmatpush1.bf16.msra.mxu0 0
          %686 = vmatprep.subr.bf16.mxu0 0
          %687 = vmatpush1.bf16.msra.mxu0 0
          %688 = vmatprep.subr.bf16.mxu0 0
          %689 = vmatpush1.bf16.msra.mxu0 0
          %690 = vmatprep.subr.bf16.mxu0 0
          %691 = vmatpush1.bf16.msra.mxu0 0
          %692 = vmatprep.subr.bf16.mxu0 0
          %693 = vmatpush1.bf16.msra.mxu0 0
          %694 = vmatprep.subr.bf16.mxu0 0
          %695 = vmatpush1.bf16.msra.mxu0 %v682
          %696 = vmatprep.subr.bf16.mxu0 0
          %697 = vmatpush1.bf16.msra.mxu0 %v673
          %698 = vmatprep.subr.bf16.mxu0 0
          %699 = vmatpush1.bf16.msra.mxu0 %v671
          %700 = vmatprep.subr.bf16.mxu0 0
          %701 = vmatpush2.bf16.msra.mxu0 0
          %702 = vmatprep.subr.bf16.mxu0 0
          %703 = vmatpush2.bf16.msra.mxu0 0
          %704 = vmatprep.subr.bf16.mxu0 0
          %705 = vmatpush2.bf16.msra.mxu0 0
          %706 = vmatprep.subr.bf16.mxu0 0
          %707 = vmatpush2.bf16.msra.mxu0 0
          %708 = vmatprep.subr.bf16.mxu0 0
          %709 = vmatpush2.bf16.msra.mxu0 0
          %710 = vmatprep.subr.bf16.mxu0 0
          %711 = vmatpush2.bf16.msra.mxu0 0
          %712 = vmatprep.subr.bf16.mxu0 0
          %713 = vmatpush2.bf16.msra.mxu0 0
          %714 = vmatprep.subr.bf16.mxu0 0
          %715 = vmatpush2.bf16.msra.mxu0 0
          %716 = vmatprep.mubr.bf16.mxu0 0
          %717 = vmatmul.mubr.bf16.gmra.mxu0 %v679
          %v718 = vpop.f32.mrf.mxu0
          %v719 = vadd.f32 0.0, %v718
          %v720 = vpop.f32.mrf.mxu0
          %v721 = vpop.f32.mrf.mxu0
          %v722 = vpop.f32.mrf.mxu0
          %723 = vdwg.mxu0
          %v724 = vpack.c.bf16 %v719, %v719
          %v726 = vunpack.c.l.b16 %v724
          %v727 = vpack.c.b16 %v726, %v726
          %728 = vrot.lane.b32.xlu0 %v727, 16
          %v729 = vpop.permute.xlu0 %728
          %vm731 = vcmask 257152
          %732 = vst.msk [vmem:[#allocation2] sm:$0xf] %vm731, %v729
          %v733 = vld [vmem:[#allocation2] sm:$0xf]
          %v734 = vld [vmem:[%s408] sm:$0xf]
          %v735 = vld [vmem:[%s408 + $0x4] sm:$0xf]
          %v736 = vld [vmem:[%s408 + $0x8] sm:$0xf]
          %v737 = vld [vmem:[%s408 + $0xc] sm:$0xf]
          %v739 = vlaneseq
          %v740 = vshrl.u32 %v739, 7
          %v741 = vsub.s32 0, %v740
          %v742 = vrot.slane %v416, %v741
          %v748 = vunpack.c.l.b16 %v734
          %v749 = vunpack.c.l.b16 %v735
          %v750 = vunpack.c.l.b16 %v736
          %v751 = vunpack.c.l.b16 %v737
          %v752 = vpack.c.b16 %v749, %v748
          %v753 = vpack.c.b16 %v751, %v750
          %v757 = vsel %vm436, %v733, 0
          %759 = vmatprep.subr.bf16.mxu0 0
          %760 = vmatpush1.bf16.msra.mxu0 0
          %761 = vmatprep.subr.bf16.mxu0 0
          %762 = vmatpush1.bf16.msra.mxu0 0
          %763 = vmatprep.subr.bf16.mxu0 0
          %764 = vmatpush1.bf16.msra.mxu0 0
          %765 = vmatprep.subr.bf16.mxu0 0
          %766 = vmatpush1.bf16.msra.mxu0 0
          %767 = vmatprep.subr.bf16.mxu0 0
          %768 = vmatpush1.bf16.msra.mxu0 0
          %769 = vmatprep.subr.bf16.mxu0 0
          %770 = vmatpush1.bf16.msra.mxu0 0
          %771 = vmatprep.subr.bf16.mxu0 0
          %772 = vmatpush1.bf16.msra.mxu0 %v753
          %773 = vmatprep.subr.bf16.mxu0 0
          %774 = vmatpush1.bf16.msra.mxu0 %v752
          %775 = vmatprep.subr.bf16.mxu0 0
          %776 = vmatpush2.bf16.msra.mxu0 0
          %777 = vmatprep.subr.bf16.mxu0 0
          %778 = vmatpush2.bf16.msra.mxu0 0
          %779 = vmatprep.subr.bf16.mxu0 0
          %780 = vmatpush2.bf16.msra.mxu0 0
          %781 = vmatprep.subr.bf16.mxu0 0
          %782 = vmatpush2.bf16.msra.mxu0 0
          %783 = vmatprep.subr.bf16.mxu0 0
          %784 = vmatpush2.bf16.msra.mxu0 0
          %785 = vmatprep.subr.bf16.mxu0 0
          %786 = vmatpush2.bf16.msra.mxu0 0
          %787 = vmatprep.subr.bf16.mxu0 0
          %788 = vmatpush2.bf16.msra.mxu0 0
          %789 = vmatprep.subr.bf16.mxu0 0
          %790 = vmatpush2.bf16.msra.mxu0 0
          %791 = vmatprep.mubr.bf16.mxu0 0
          %792 = vmatmul.mubr.bf16.gmra.mxu0 %v757
          %v793 = vpop.f32.mrf.mxu0
          %v794 = vadd.f32 %v742, %v793
          %v795 = vpop.f32.mrf.mxu0
          %v796 = vpop.f32.mrf.mxu0
          %v797 = vpop.f32.mrf.mxu0
          %798 = vdwg.mxu0
          %s799 = smul.u32 %s418, 8
          %s800 = scalar_lea.vmem %s376, %s799 [#allocation3]
          %801 = vst [vmem:[%s800] sm:$0xff] %v794
        $region53: #{tpu_custom_call.1} parent=47 // loop_footer
          %s422 = sadd.s32 1, %s418
        $region54: #{tpu_custom_call.1} parent=47 // loop_footer_branch
          %417 = sbr.rel target = $region50
        $region55: #{tpu_custom_call.1} parent=47 // loop_exit
          _
        %s802 = sand.u32 %s227, 1
        %s803 = scalar_lea.sflag [#allocation4], %s802
        %s804 = sand.u32 %s227, 1
        %s805 = smul.addr %s804, 16
        %s806 = scalar_lea.vmem [#allocation3], %s805
        // Predicated region
        $region56: #{tpu_custom_call.1} parent=47 // pred_check
          %p807 = pneg %p237
        $region57: #{tpu_custom_call.1} parent=47 // pred_check_branch
          %809 = sbr.rel (%p807) target = $region59
        $region58: #{tpu_custom_call.1} parent=47 // pred_region
          %s810 = smul.u32 2, %s26
          %s812 = ssub.s32 256, 256
          %813 = vsyncadd %s803, %s812
          %s814 = smul.addr %s810, 2
          %s815 = sadd.s32 %s25, %s814
          %s816 = smul.addr %s815, 128
          %s817 = scalar_lea.hbm %s7, %s816
          %s818 = sshll.u32 %s806, 4
          %s819 = int_to_ptr.vmem [resolvable:$true] %s818
          %824 = dma.vmem_to_hbm [thread:$0]  %s819, 256, %s817, %s803, 128, 256, 8
        $region59: #{tpu_custom_call.1} parent=47 // pred_fallthru
          _
      $region48: #{tpu_custom_call.1} parent=5 // pred_fallthru
        _
      %p825 = scmp.le.s32.totalorder 2, %s16
      // Predicated region
      $region60: #{tpu_custom_call.1} parent=5 // pred_check
        %p826 = pneg %p825
      $region61: #{tpu_custom_call.1} parent=5 // pred_check_branch
        %828 = sbr.rel (%p826) target = $region63
      $region62: #{tpu_custom_call.1} parent=5 // pred_region
        %s829 = ssub.s32 %s16, 2
        // Predicated region
        $region64: #{tpu_custom_call.1} parent=62 // pred_check
          %p830 = pneg %p243
        $region65: #{tpu_custom_call.1} parent=62 // pred_check_branch
          %832 = sbr.rel (%p830) target = $region67
        $region66: #{tpu_custom_call.1} parent=62 // pred_region
          %s833 = sand.u32 %s228, 1
          %s834 = scalar_lea.sflag [#allocation4], %s833
          %s835 = sand.u32 %s228, 1
          %s836 = smul.addr %s835, 16
          %s837 = scalar_lea.vmem [#allocation3], %s836
          %838 = dma.done %s834, 256
        $region67: #{tpu_custom_call.1} parent=62 // pred_fallthru
          _
      $region63: #{tpu_custom_call.1} parent=5 // pred_fallthru
        _
    $region6: #{tpu_custom_call.1} parent=1 // loop_footer
      %s20 = sadd.s32 1, %s16
    $region7: #{tpu_custom_call.1} parent=1 // loop_footer_branch
      %15 = sbr.rel target = $region3
    $region8: #{tpu_custom_call.1} parent=1 // loop_exit
      _
    %839 = vsyncpa [#allocation4], 1
    %s840 = scalar_lea.sflag [#allocation4], 1
    %841 = vsyncpa %s840, 1

</llo_original>
